<compile_context>
chip_gen: v7x
topology: tpu7x:2x2x1
jax: 0.10.0
libtpu: 0.0.40
codegen_flags: <defaults>
</compile_context>

<pallas_src>
import functools

import jax
import jax.numpy as jnp
from jax import lax
from jax.experimental import pallas as pl
from jax.experimental.pallas import tpu as pltpu

BN_EPS = 1e-5


def _round_up(x, m):
    return (x + m - 1) // m * m


# ----------------------------------------------------------------------------
# Fused kernel: all three conv stages + shortcut + residual add + ReLU
# ----------------------------------------------------------------------------
def _fused_bottleneck_kernel(*refs, th, W, has_proj, cchunk):
    if has_proj:
        (x_ref, w1_ref, b1_ref, w2_ref, b2_ref, w3_ref, b3_ref,
         wsc_ref, bsc_ref, o_ref, y1p) = refs
    else:
        (x_ref, w1_ref, b1_ref, w2_ref, b2_ref, w3_ref, b3_ref,
         o_ref, y1p) = refs
        wsc_ref = bsc_ref = None

    i = pl.program_id(1)
    n_th = pl.num_programs(1)
    r0 = i * th

    cin = x_ref.shape[-1]
    chid = w1_ref.shape[-1]
    cout = o_ref.shape[-1]
    C0 = 8                      # left zero-pad columns (sublane-aligned store)
    WP = y1p.shape[1]

    # ---- padding: zero only what the 3x3 taps actually read.
    #   * left / right pad column blocks every step (scratch is persistent),
    #   * the top / bottom halo row only at the image boundary.
    y1p[:, 0:C0, :] = jnp.zeros((th + 2, C0, chid), y1p.dtype)
    y1p[:, C0 + W:, :] = jnp.zeros((th + 2, WP - (C0 + W), chid), y1p.dtype)

    @pl.when(i == 0)
    def _():
        y1p[0:1, :, :] = jnp.zeros((1, WP, chid), y1p.dtype)

    @pl.when(i == n_th - 1)
    def _():
        y1p[th + 1:th + 2, :, :] = jnp.zeros((1, WP, chid), y1p.dtype)

    # ---- stage 1: 1x1 conv (BN folded into weights) + ReLU into bf16 scratch.
    w1 = w1_ref[...]            # (cin, chid) bf16 (scale-folded)
    b1 = b1_ref[...]            # (1, chid)   f32

    def stage1(x2d):            # (rows, cin) -> (rows, chid) bf16
        acc = jnp.dot(x2d.astype(jnp.bfloat16), w1,
                      preferred_element_type=jnp.float32)
        return jnp.maximum(acc + b1, 0.0).astype(y1p.dtype)

    x_body = x_ref[0, pl.ds(r0, th), :, :]               # (th, W, cin)
    x_body2d = x_body.reshape(th * W, cin)
    y1p[1:th + 1, C0:C0 + W, :] = stage1(x_body2d).reshape(th, W, chid)

    @pl.when(i > 0)                                      # halo row above tile
    def _():
        xt = x_ref[0, pl.ds(r0 - 1, 1), :, :].reshape(W, cin)
        y1p[0:1, C0:C0 + W, :] = stage1(xt).reshape(1, W, chid)

    @pl.when(i < n_th - 1)                               # halo row below tile
    def _():
        xb = x_ref[0, pl.ds(r0 + th, 1), :, :].reshape(W, cin)
        y1p[th + 1:th + 2, C0:C0 + W, :] = stage1(xb).reshape(1, W, chid)

    # ---- stage 2 + 3: 3x3 conv (+BN+ReLU) chunked over hidden channels; each
    # chunk feeds straight into the final 1x1 conv accumulator.
    # Read the three horizontally shifted windows ONCE (instead of 9 tap-window
    # reads); ky is then a free leading-dim slice of those values.
    win = [y1p[0:th + 2, C0 - 1 + kx:C0 - 1 + kx + W, :] for kx in range(3)]

    b2 = b2_ref[...]                                     # (1, chid) f32
    main = jnp.zeros((th * W, cout), jnp.float32)
    for c0 in range(0, chid, cchunk):
        cs = min(cchunk, chid - c0)
        acc = jnp.zeros((th * W, cs), jnp.float32)
        for ky in range(3):
            for kx in range(3):
                tap2d = win[kx][ky:ky + th].reshape(th * W, chid)
                acc += jnp.dot(tap2d, w2_ref[ky * 3 + kx, :, c0:c0 + cs],
                               preferred_element_type=jnp.float32)
        y2c = jnp.maximum(acc + b2[:, c0:c0 + cs], 0.0).astype(jnp.bfloat16)
        main += jnp.dot(y2c, w3_ref[c0:c0 + cs, :],
                        preferred_element_type=jnp.float32)
    main += b3_ref[...]

    # ---- shortcut, residual add, ReLU.
    if has_proj:
        sc = jnp.dot(x_body2d.astype(jnp.bfloat16), wsc_ref[...],
                     preferred_element_type=jnp.float32) + bsc_ref[...]
    else:
        sc = x_body2d.astype(jnp.float32)                # identity (cin==cout)
    out = jnp.maximum(main + sc, 0.0)
    o_ref[...] = out.reshape(1, th, W, cout).astype(o_ref.dtype)


# ----------------------------------------------------------------------------
# Parameter init (deterministic, synthetic) and BN folding
# ----------------------------------------------------------------------------
def init_params(key, cin, chid, cout, dtype=jnp.float32):
    ks = list(jax.random.split(key, 24))

    def conv_w(k, kh, kw, ci, co):
        return (0.1 * jax.random.normal(k, (kh, kw, ci, co))).astype(dtype)

    def bn_params(k, c):
        k0, k1, k2, k3 = jax.random.split(k, 4)
        gamma = jax.random.uniform(k0, (c,), dtype, 0.5, 1.5)
        beta = (0.1 * jax.random.normal(k1, (c,))).astype(dtype)
        mean = (0.1 * jax.random.normal(k2, (c,))).astype(dtype)
        var = jax.random.uniform(k3, (c,), dtype, 0.5, 1.5)
        return (gamma, beta, mean, var)

    p = {
        "w1": conv_w(ks[0], 1, 1, cin, chid), "bn1": bn_params(ks[1], chid),
        "w2": conv_w(ks[2], 3, 3, chid, chid), "bn2": bn_params(ks[3], chid),
        "w3": conv_w(ks[4], 1, 1, chid, cout), "bn3": bn_params(ks[5], cout),
    }
    if cin != cout:
        p["wsc"] = conv_w(ks[6], 1, 1, cin, cout)
        p["bsc"] = (0.1 * jax.random.normal(ks[7], (cout,))).astype(dtype)
        p["bnsc"] = bn_params(ks[8], cout)
    return p


def fold_bn(bn, conv_bias=None):
    gamma, beta, mean, var = bn
    scale = gamma / jnp.sqrt(var + BN_EPS)
    if conv_bias is None:
        bias = beta - mean * scale
    else:
        bias = (conv_bias - mean) * scale + beta
    return scale, bias


def _pick_th(H, W):
    # Any divisor of H is acceptable (7/14/28 for ResNet stages); target
    # th*W >= 256 so the MXU M dim stays filled, prefer sublane-aligned th*W.
    divs = sorted(d for d in range(1, H + 1) if H % d == 0)
    cands = [d for d in divs if d * W >= 256] or [H]
    aligned = [d for d in cands if (d * W) % 8 == 0]
    return (aligned or cands)[0]


# ----------------------------------------------------------------------------
# Fused BottleNeck forward — native NHWC entry point
# ----------------------------------------------------------------------------
def bottleneck_pallas_nhwc(x_nhwc, p, *, th=None):
    N, H, W, cin = x_nhwc.shape
    chid = p["w1"].shape[-1]
    cout = p["w3"].shape[-1]
    has_proj = "wsc" in p

    if th is None:
        th = _pick_th(H, W)
    if H % th != 0:
        th = H
    n_th = H // th
    C0 = 8
    WP = C0 + _round_up(W + 1, 8)       # padded scratch width (>= C0 + W + 1)
    cchunk = min(chid, 256)             # stage-2 output-channel chunk width

    f32, bf16 = jnp.float32, jnp.bfloat16

    # Fold BN scale into conv weights; keep only a per-channel bias in-kernel.
    s1, b1 = fold_bn(p["bn1"])
    s2, b2 = fold_bn(p["bn2"])
    s3, b3 = fold_bn(p["bn3"])
    w1f = (p["w1"][0, 0].astype(f32) * s1[None, :]).astype(bf16)
    w2f = (p["w2"].astype(f32) * s2[None, None, None, :]
           ).reshape(9, chid, chid).astype(bf16)
    w3f = (p["w3"][0, 0].astype(f32) * s3[None, :]).astype(bf16)
    b1 = b1.reshape(1, chid).astype(f32)
    b2 = b2.reshape(1, chid).astype(f32)
    b3 = b3.reshape(1, cout).astype(f32)

    in_specs = [
        pl.BlockSpec((1, H, W, cin), lambda n, i: (n, 0, 0, 0)),  # x (resident over i)
        pl.BlockSpec((cin, chid), lambda n, i: (0, 0)),
        pl.BlockSpec((1, chid), lambda n, i: (0, 0)),
        pl.BlockSpec((9, chid, chid), lambda n, i: (0, 0, 0)),
        pl.BlockSpec((1, chid), lambda n, i: (0, 0)),
        pl.BlockSpec((chid, cout), lambda n, i: (0, 0)),
        pl.BlockSpec((1, cout), lambda n, i: (0, 0)),
    ]
    args = [x_nhwc, w1f, b1, w2f, b2, w3f, b3]   # x kept in its own dtype

    w_bytes = (w1f.size + w2f.size + w3f.size) * 2 \
        + (b1.size + b2.size + b3.size) * 4
    if has_proj:
        ssc, bsc = fold_bn(p["bnsc"], conv_bias=p["bsc"])
        wscf = (p["wsc"][0, 0].astype(f32) * ssc[None, :]).astype(bf16)
        bscf = bsc.reshape(1, cout).astype(f32)
        in_specs += [pl.BlockSpec((cin, cout), lambda n, i: (0, 0)),
                     pl.BlockSpec((1, cout), lambda n, i: (0, 0))]
        args += [wscf, bscf]
        w_bytes += wscf.size * 2 + bscf.size * 4
    else:
        assert cin == cout, "identity shortcut requires cin == cout"

    out_dtype = x_nhwc.dtype
    x_itemsize = jnp.dtype(x_nhwc.dtype).itemsize
    out_itemsize = jnp.dtype(out_dtype).itemsize

    # Explicit VMEM budget: double-buffered x / out blocks, double-buffered
    # weights (see TODO above about single-buffering), bf16 scratch. Capped by
    # the physical VMEM of the current chip with ~15% headroom.
    est = (2 * H * W * cin * x_itemsize
           + 2 * th * W * cout * out_itemsize
           + 2 * w_bytes
           + (th + 2) * WP * chid * 2)
    try:
        vmem_cap = int(pltpu.get_tpu_info().vmem_capacity_bytes)
    except Exception:
        vmem_cap = 64 << 20
    vmem_limit = int(min(max(est + (4 << 20), 16 << 20), (vmem_cap * 85) // 100))

    kernel = functools.partial(_fused_bottleneck_kernel,
                               th=th, W=W, has_proj=has_proj, cchunk=cchunk)

    return pl.pallas_call(
        kernel,
        out_shape=jax.ShapeDtypeStruct((N, H, W, cout), out_dtype),
        grid_spec=pltpu.PrefetchScalarGridSpec(
            num_scalar_prefetch=0,
            grid=(N, n_th),
            in_specs=in_specs,
            out_specs=pl.BlockSpec((1, th, W, cout), lambda n, i: (n, i, 0, 0)),
            scratch_shapes=[pltpu.VMEM((th + 2, WP, chid), jnp.bfloat16)],
        ),
        compiler_params=pltpu.CompilerParams(
            dimension_semantics=("parallel", "parallel"),
            vmem_limit_bytes=vmem_limit),
    )(*args)


def bottleneck_pallas(x_nchw, p, *, th=None):
    # PyTorch-parity entry point (NCHW).  In a full network keep activations
    # NHWC end-to-end and call bottleneck_pallas_nhwc directly to avoid these
    # boundary transposes.
    x = jnp.transpose(x_nchw, (0, 2, 3, 1))
    out = bottleneck_pallas_nhwc(x, p, th=th)
    return jnp.transpose(out, (0, 3, 1, 2))


# ----------------------------------------------------------------------------
# Pure-JAX reference (unfolded BN, lax.conv) for validation
# ----------------------------------------------------------------------------
def bottleneck_reference(x_nchw, p):
    x = jnp.transpose(x_nchw, (0, 2, 3, 1))
    dn = ("NHWC", "HWIO", "NHWC")

    def conv(inp, w, pad):
        return lax.conv_general_dilated(inp, w, (1, 1), pad,
                                        dimension_numbers=dn)

    def bn(inp, params):
        gamma, beta, mean, var = params
        return (inp - mean) / jnp.sqrt(var + BN_EPS) * gamma + beta

    out = jax.nn.relu(bn(conv(x, p["w1"], [(0, 0), (0, 0)]), p["bn1"]))
    out = jax.nn.relu(bn(conv(out, p["w2"], [(1, 1), (1, 1)]), p["bn2"]))
    out = bn(conv(out, p["w3"], [(0, 0), (0, 0)]), p["bn3"])
    if "wsc" in p:
        sc = bn(conv(x, p["wsc"], [(0, 0), (0, 0)]) + p["bsc"], p["bnsc"])
    else:
        sc = x
    out = jax.nn.relu(out + sc)
    return jnp.transpose(out, (0, 3, 1, 2))


if __name__ == "__main__":
    key = jax.random.PRNGKey(0)
    k_x, k_p, k_p2 = jax.random.split(key, 3)

    N, HW = 2, 16

    # Case 1: projection shortcut (cin != cout); th=8 exercises the row-tile
    # halo paths (top / interior / bottom tiles) and selective pad zeroing.
    CIN, HID, COUT = 4, 8, 16
    x = jax.random.normal(k_x, (N, CIN, HW, HW), jnp.float32)     # NCHW
    params = init_params(k_p, CIN, HID, COUT)
    out = jax.block_until_ready(bottleneck_pallas(x, params, th=8))
    ref = jax.block_until_ready(bottleneck_reference(x, params))
    assert out.shape == (N, COUT, HW, HW), out.shape
    assert jnp.allclose(out, ref, rtol=2e-2, atol=2e-2), \
        float(jnp.max(jnp.abs(out - ref)))

    # Case 2: identity shortcut (cin == cout); single-tile (whole image) path.
    CIN2, HID2, COUT2 = 16, 8, 16
    x2 = jax.random.normal(k_x, (N, CIN2, HW, HW), jnp.float32)
    params2 = init_params(k_p2, CIN2, HID2, COUT2)
    out2 = jax.block_until_ready(bottleneck_pallas(x2, params2))
    ref2 = jax.block_until_ready(bottleneck_reference(x2, params2))
    assert out2.shape == (N, COUT2, HW, HW), out2.shape
    assert jnp.allclose(out2, ref2, rtol=2e-2, atol=2e-2), \
        float(jnp.max(jnp.abs(out2 - ref2)))

    print("KERNEL_OK")
</pallas_src>

<mosaic_0001>
module attributes {stable_mosaic.version = 11 : i64} {
  func.func @_fused_bottleneck_kernel(%arg0: i32, %arg1: i32, %arg2: memref<1x16x16x4xf32, #tpu.memory_space<vmem>>, %arg3: memref<4x8xbf16, #tpu.memory_space<vmem>>, %arg4: memref<1x8xf32, #tpu.memory_space<vmem>>, %arg5: memref<9x8x8xbf16, #tpu.memory_space<vmem>>, %arg6: memref<1x8xf32, #tpu.memory_space<vmem>>, %arg7: memref<8x16xbf16, #tpu.memory_space<vmem>>, %arg8: memref<1x16xf32, #tpu.memory_space<vmem>>, %arg9: memref<4x16xbf16, #tpu.memory_space<vmem>>, %arg10: memref<1x16xf32, #tpu.memory_space<vmem>>, %arg11: memref<1x8x16x16xf32, #tpu.memory_space<vmem>>, %arg12: memref<10x32x8xbf16, #tpu.memory_space<vmem>>) attributes {dimension_semantics = [#tpu.dimension_semantics<parallel>, #tpu.dimension_semantics<parallel>], iteration_bounds = array<i64: 2, 2>, scalar_prefetch = 0 : i64, scratch_operands = 1 : i64, tpu.core_type = #tpu.core_type<tc>, window_params = [{transform_indices = @transform_0, window_bounds = array<i64: 1, 16, 16, 4>}, {pipeline_mode = #tpu.pipeline_mode<synchronous>, transform_indices = @transform_1, window_bounds = array<i64: 4, 8>}, {pipeline_mode = #tpu.pipeline_mode<synchronous>, transform_indices = @transform_2, window_bounds = array<i64: 1, 8>}, {pipeline_mode = #tpu.pipeline_mode<synchronous>, transform_indices = @transform_3, window_bounds = array<i64: 9, 8, 8>}, {pipeline_mode = #tpu.pipeline_mode<synchronous>, transform_indices = @transform_4, window_bounds = array<i64: 1, 8>}, {pipeline_mode = #tpu.pipeline_mode<synchronous>, transform_indices = @transform_5, window_bounds = array<i64: 8, 16>}, {pipeline_mode = #tpu.pipeline_mode<synchronous>, transform_indices = @transform_6, window_bounds = array<i64: 1, 16>}, {pipeline_mode = #tpu.pipeline_mode<synchronous>, transform_indices = @transform_7, window_bounds = array<i64: 4, 16>}, {pipeline_mode = #tpu.pipeline_mode<synchronous>, transform_indices = @transform_8, window_bounds = array<i64: 1, 16>}, {transform_indices = @transform_9, window_bounds = array<i64: 1, 8, 16, 16>}]} {
    %c8_i32 = arith.constant 8 : i32
    %0 = arith.muli %arg1, %c8_i32 : i32
    %cst = arith.constant 0.000000e+00 : bf16
    %1 = vector.broadcast %cst : bf16 to vector<10x8x8xbf16>
    %c0 = arith.constant 0 : index
    %c0_0 = arith.constant 0 : index
    %c0_1 = arith.constant 0 : index
    %2 = vector.load %arg12[%c0, %c0_0, %c0_1] : memref<10x32x8xbf16, #tpu.memory_space<vmem>>, vector<10x8x8xbf16>
    tpu.vector_store %arg12[%c0, %c0_0, %c0_1], %1 {strides = array<i32>} : memref<10x32x8xbf16, #tpu.memory_space<vmem>>, vector<10x8x8xbf16>,
    %cst_2 = arith.constant 0.000000e+00 : bf16
    %3 = vector.broadcast %cst_2 : bf16 to vector<10x8x8xbf16>
    %c0_3 = arith.constant 0 : index
    %c24 = arith.constant 24 : index
    %c0_4 = arith.constant 0 : index
    %4 = vector.load %arg12[%c0_3, %c24, %c0_4] : memref<10x32x8xbf16, #tpu.memory_space<vmem>>, vector<10x8x8xbf16>
    tpu.vector_store %arg12[%c0_3, %c24, %c0_4], %3 {strides = array<i32>} : memref<10x32x8xbf16, #tpu.memory_space<vmem>>, vector<10x8x8xbf16>,
    %c0_i32 = arith.constant 0 : i32
    %5 = arith.cmpi eq, %arg1, %c0_i32 : i32
    %6 = arith.extui %5 : i1 to i32
    %c0_i32_5 = arith.constant 0 : i32
    %7 = arith.cmpi ne, %6, %c0_i32_5 : i32
    scf.if %7 {
      %cst_79 = arith.constant 0.000000e+00 : bf16
      %114 = vector.broadcast %cst_79 : bf16 to vector<1x32x8xbf16>
      %c0_80 = arith.constant 0 : index
      %c0_81 = arith.constant 0 : index
      %c0_82 = arith.constant 0 : index
      %115 = vector.load %arg12[%c0_80, %c0_81, %c0_82] : memref<10x32x8xbf16, #tpu.memory_space<vmem>>, vector<1x32x8xbf16>
      tpu.vector_store %arg12[%c0_80, %c0_81, %c0_82], %114 {strides = array<i32>} : memref<10x32x8xbf16, #tpu.memory_space<vmem>>, vector<1x32x8xbf16>,
    } else {
    }
    %c1_i32 = arith.constant 1 : i32
    %8 = arith.cmpi eq, %arg1, %c1_i32 : i32
    %9 = arith.extui %8 : i1 to i32
    %c0_i32_6 = arith.constant 0 : i32
    %10 = arith.cmpi ne, %9, %c0_i32_6 : i32
    scf.if %10 {
      %cst_79 = arith.constant 0.000000e+00 : bf16
      %114 = vector.broadcast %cst_79 : bf16 to vector<1x32x8xbf16>
      %c9_80 = arith.constant 9 : index
      %c0_81 = arith.constant 0 : index
      %c0_82 = arith.constant 0 : index
      %115 = vector.load %arg12[%c9_80, %c0_81, %c0_82] : memref<10x32x8xbf16, #tpu.memory_space<vmem>>, vector<1x32x8xbf16>
      tpu.vector_store %arg12[%c9_80, %c0_81, %c0_82], %114 {strides = array<i32>} : memref<10x32x8xbf16, #tpu.memory_space<vmem>>, vector<1x32x8xbf16>,
    } else {
    }
    %c0_7 = arith.constant 0 : index
    %c0_8 = arith.constant 0 : index
    %11 = vector.load %arg3[%c0_7, %c0_8] : memref<4x8xbf16, #tpu.memory_space<vmem>>, vector<4x8xbf16>
    %c0_9 = arith.constant 0 : index
    %c0_10 = arith.constant 0 : index
    %12 = vector.load %arg4[%c0_9, %c0_10] : memref<1x8xf32, #tpu.memory_space<vmem>>, vector<1x8xf32>
    %c0_11 = arith.constant 0 : index
    %13 = arith.index_cast %0 : i32 to index
    %c0_12 = arith.constant 0 : index
    %c0_13 = arith.constant 0 : index
    %14 = vector.load %arg2[%c0_11, %13, %c0_12, %c0_13] : memref<1x16x16x4xf32, #tpu.memory_space<vmem>>, vector<1x8x16x4xf32>
    %15 = vector.shape_cast %14 : vector<1x8x16x4xf32> to vector<8x16x4xf32>
    %16 = vector.shape_cast %15 : vector<8x16x4xf32> to vector<128x4xf32>
    %17 = arith.truncf %16 : vector<128x4xf32> to vector<128x4xbf16>
    %cst_14 = arith.constant dense<0.000000e+00> : vector<128x8xf32>
    %18 = tpu.matmul %17, %11, %cst_14 {dimension_numbers = #tpu.dot_dimension_numbers<[1], [0], [0], [1], [0, 0, 1, 1], [], []>} : vector<128x4xbf16>, vector<4x8xbf16>, vector<128x8xf32> -> vector<128x8xf32>
    %19 = vector.broadcast %12 : vector<1x8xf32> to vector<128x8xf32>
    %20 = arith.addf %18, %19 : vector<128x8xf32>
    %cst_15 = arith.constant 0.000000e+00 : f32
    %21 = vector.broadcast %cst_15 : f32 to vector<128x8xf32>
    %22 = arith.maximumf %20, %21 : vector<128x8xf32>
    %23 = arith.truncf %22 : vector<128x8xf32> to vector<128x8xbf16>
    %24 = vector.shape_cast %23 : vector<128x8xbf16> to vector<8x16x8xbf16>
    %c1 = arith.constant 1 : index
    %c8 = arith.constant 8 : index
    %c0_16 = arith.constant 0 : index
    %25 = vector.load %arg12[%c1, %c8, %c0_16] : memref<10x32x8xbf16, #tpu.memory_space<vmem>>, vector<8x16x8xbf16>
    tpu.vector_store %arg12[%c1, %c8, %c0_16], %24 {strides = array<i32>} : memref<10x32x8xbf16, #tpu.memory_space<vmem>>, vector<8x16x8xbf16>,
    %c0_i32_17 = arith.constant 0 : i32
    %26 = arith.cmpi sgt, %arg1, %c0_i32_17 : i32
    %27 = arith.extui %26 : i1 to i32
    %c0_i32_18 = arith.constant 0 : i32
    %28 = arith.cmpi ne, %27, %c0_i32_18 : i32
    scf.if %28 {
      %c1_i32_79 = arith.constant 1 : i32
      %114 = arith.subi %0, %c1_i32_79 : i32
      %c0_80 = arith.constant 0 : index
      %115 = arith.index_cast %114 : i32 to index
      %c0_81 = arith.constant 0 : index
      %c0_82 = arith.constant 0 : index
      %116 = vector.load %arg2[%c0_80, %115, %c0_81, %c0_82] : memref<1x16x16x4xf32, #tpu.memory_space<vmem>>, vector<1x1x16x4xf32>
      %117 = vector.shape_cast %116 : vector<1x1x16x4xf32> to vector<1x16x4xf32>
      %118 = vector.shape_cast %117 : vector<1x16x4xf32> to vector<16x4xf32>
      %119 = arith.truncf %118 : vector<16x4xf32> to vector<16x4xbf16>
      %cst_83 = arith.constant dense<0.000000e+00> : vector<16x8xf32>
      %120 = tpu.matmul %119, %11, %cst_83 {dimension_numbers = #tpu.dot_dimension_numbers<[1], [0], [0], [1], [0, 0, 1, 1], [], []>} : vector<16x4xbf16>, vector<4x8xbf16>, vector<16x8xf32> -> vector<16x8xf32>
      %121 = vector.broadcast %12 : vector<1x8xf32> to vector<16x8xf32>
      %122 = arith.addf %120, %121 : vector<16x8xf32>
      %cst_84 = arith.constant 0.000000e+00 : f32
      %123 = vector.broadcast %cst_84 : f32 to vector<16x8xf32>
      %124 = arith.maximumf %122, %123 : vector<16x8xf32>
      %125 = arith.truncf %124 : vector<16x8xf32> to vector<16x8xbf16>
      %126 = vector.shape_cast %125 : vector<16x8xbf16> to vector<1x16x8xbf16>
      %c0_85 = arith.constant 0 : index
      %c8_86 = arith.constant 8 : index
      %c0_87 = arith.constant 0 : index
      %127 = vector.load %arg12[%c0_85, %c8_86, %c0_87] : memref<10x32x8xbf16, #tpu.memory_space<vmem>>, vector<1x16x8xbf16>
      tpu.vector_store %arg12[%c0_85, %c8_86, %c0_87], %126 {strides = array<i32>} : memref<10x32x8xbf16, #tpu.memory_space<vmem>>, vector<1x16x8xbf16>,
    } else {
    }
    %c1_i32_19 = arith.constant 1 : i32
    %29 = arith.cmpi slt, %arg1, %c1_i32_19 : i32
    %30 = arith.extui %29 : i1 to i32
    %c0_i32_20 = arith.constant 0 : i32
    %31 = arith.cmpi ne, %30, %c0_i32_20 : i32
    scf.if %31 {
      %c8_i32_79 = arith.constant 8 : i32
      %114 = arith.addi %0, %c8_i32_79 : i32
      %c0_80 = arith.constant 0 : index
      %115 = arith.index_cast %114 : i32 to index
      %c0_81 = arith.constant 0 : index
      %c0_82 = arith.constant 0 : index
      %116 = vector.load %arg2[%c0_80, %115, %c0_81, %c0_82] : memref<1x16x16x4xf32, #tpu.memory_space<vmem>>, vector<1x1x16x4xf32>
      %117 = vector.shape_cast %116 : vector<1x1x16x4xf32> to vector<1x16x4xf32>
      %118 = vector.shape_cast %117 : vector<1x16x4xf32> to vector<16x4xf32>
      %119 = arith.truncf %118 : vector<16x4xf32> to vector<16x4xbf16>
      %cst_83 = arith.constant dense<0.000000e+00> : vector<16x8xf32>
      %120 = tpu.matmul %119, %11, %cst_83 {dimension_numbers = #tpu.dot_dimension_numbers<[1], [0], [0], [1], [0, 0, 1, 1], [], []>} : vector<16x4xbf16>, vector<4x8xbf16>, vector<16x8xf32> -> vector<16x8xf32>
      %121 = vector.broadcast %12 : vector<1x8xf32> to vector<16x8xf32>
      %122 = arith.addf %120, %121 : vector<16x8xf32>
      %cst_84 = arith.constant 0.000000e+00 : f32
      %123 = vector.broadcast %cst_84 : f32 to vector<16x8xf32>
      %124 = arith.maximumf %122, %123 : vector<16x8xf32>
      %125 = arith.truncf %124 : vector<16x8xf32> to vector<16x8xbf16>
      %126 = vector.shape_cast %125 : vector<16x8xbf16> to vector<1x16x8xbf16>
      %c9_85 = arith.constant 9 : index
      %c8_86 = arith.constant 8 : index
      %c0_87 = arith.constant 0 : index
      %127 = vector.load %arg12[%c9_85, %c8_86, %c0_87] : memref<10x32x8xbf16, #tpu.memory_space<vmem>>, vector<1x16x8xbf16>
      tpu.vector_store %arg12[%c9_85, %c8_86, %c0_87], %126 {strides = array<i32>} : memref<10x32x8xbf16, #tpu.memory_space<vmem>>, vector<1x16x8xbf16>,
    } else {
    }
    %c0_21 = arith.constant 0 : index
    %c7 = arith.constant 7 : index
    %c0_22 = arith.constant 0 : index
    %32 = vector.load %arg12[%c0_21, %c7, %c0_22] : memref<10x32x8xbf16, #tpu.memory_space<vmem>>, vector<10x16x8xbf16>
    %c0_23 = arith.constant 0 : index
    %c8_24 = arith.constant 8 : index
    %c0_25 = arith.constant 0 : index
    %33 = vector.load %arg12[%c0_23, %c8_24, %c0_25] : memref<10x32x8xbf16, #tpu.memory_space<vmem>>, vector<10x16x8xbf16>
    %c0_26 = arith.constant 0 : index
    %c9 = arith.constant 9 : index
    %c0_27 = arith.constant 0 : index
    %34 = vector.load %arg12[%c0_26, %c9, %c0_27] : memref<10x32x8xbf16, #tpu.memory_space<vmem>>, vector<10x16x8xbf16>
    %c0_28 = arith.constant 0 : index
    %c0_29 = arith.constant 0 : index
    %35 = vector.load %arg6[%c0_28, %c0_29] : memref<1x8xf32, #tpu.memory_space<vmem>>, vector<1x8xf32>
    %cst_30 = arith.constant 0.000000e+00 : f32
    %36 = vector.broadcast %cst_30 : f32 to vector<128x16xf32>
    %cst_31 = arith.constant 0.000000e+00 : f32
    %37 = vector.broadcast %cst_31 : f32 to vector<128x8xf32>
    %38 = vector.extract_strided_slice %32 {offsets = [0, 0, 0], sizes = [8, 16, 8], strides = [1, 1, 1]} : vector<10x16x8xbf16> to vector<8x16x8xbf16>
    %39 = vector.shape_cast %38 : vector<8x16x8xbf16> to vector<128x8xbf16>
    %c0_32 = arith.constant 0 : index
    %c0_33 = arith.constant 0 : index
    %c0_34 = arith.constant 0 : index
    %40 = vector.load %arg5[%c0_32, %c0_33, %c0_34] : memref<9x8x8xbf16, #tpu.memory_space<vmem>>, vector<1x8x8xbf16>
    %41 = vector.shape_cast %40 : vector<1x8x8xbf16> to vector<8x8xbf16>
    %cst_35 = arith.constant dense<0.000000e+00> : vector<128x8xf32>
    %42 = tpu.matmul %39, %41, %cst_35 {dimension_numbers = #tpu.dot_dimension_numbers<[1], [0], [0], [1], [0, 0, 1, 1], [], []>} : vector<128x8xbf16>, vector<8x8xbf16>, vector<128x8xf32> -> vector<128x8xf32>
    %43 = arith.addf %37, %42 : vector<128x8xf32>
    %44 = vector.extract_strided_slice %33 {offsets = [0, 0, 0], sizes = [8, 16, 8], strides = [1, 1, 1]} : vector<10x16x8xbf16> to vector<8x16x8xbf16>
    %45 = vector.shape_cast %44 : vector<8x16x8xbf16> to vector<128x8xbf16>
    %c1_36 = arith.constant 1 : index
    %c0_37 = arith.constant 0 : index
    %c0_38 = arith.constant 0 : index
    %46 = vector.load %arg5[%c1_36, %c0_37, %c0_38] : memref<9x8x8xbf16, #tpu.memory_space<vmem>>, vector<1x8x8xbf16>
    %47 = vector.shape_cast %46 : vector<1x8x8xbf16> to vector<8x8xbf16>
    %cst_39 = arith.constant dense<0.000000e+00> : vector<128x8xf32>
    %48 = tpu.matmul %45, %47, %cst_39 {dimension_numbers = #tpu.dot_dimension_numbers<[1], [0], [0], [1], [0, 0, 1, 1], [], []>} : vector<128x8xbf16>, vector<8x8xbf16>, vector<128x8xf32> -> vector<128x8xf32>
    %49 = arith.addf %43, %48 : vector<128x8xf32>
    %50 = vector.extract_strided_slice %34 {offsets = [0, 0, 0], sizes = [8, 16, 8], strides = [1, 1, 1]} : vector<10x16x8xbf16> to vector<8x16x8xbf16>
    %51 = vector.shape_cast %50 : vector<8x16x8xbf16> to vector<128x8xbf16>
    %c2 = arith.constant 2 : index
    %c0_40 = arith.constant 0 : index
    %c0_41 = arith.constant 0 : index
    %52 = vector.load %arg5[%c2, %c0_40, %c0_41] : memref<9x8x8xbf16, #tpu.memory_space<vmem>>, vector<1x8x8xbf16>
    %53 = vector.shape_cast %52 : vector<1x8x8xbf16> to vector<8x8xbf16>
    %cst_42 = arith.constant dense<0.000000e+00> : vector<128x8xf32>
    %54 = tpu.matmul %51, %53, %cst_42 {dimension_numbers = #tpu.dot_dimension_numbers<[1], [0], [0], [1], [0, 0, 1, 1], [], []>} : vector<128x8xbf16>, vector<8x8xbf16>, vector<128x8xf32> -> vector<128x8xf32>
    %55 = arith.addf %49, %54 : vector<128x8xf32>
    %56 = vector.extract_strided_slice %32 {offsets = [1, 0, 0], sizes = [8, 16, 8], strides = [1, 1, 1]} : vector<10x16x8xbf16> to vector<8x16x8xbf16>
    %57 = vector.shape_cast %56 : vector<8x16x8xbf16> to vector<128x8xbf16>
    %c3 = arith.constant 3 : index
    %c0_43 = arith.constant 0 : index
    %c0_44 = arith.constant 0 : index
    %58 = vector.load %arg5[%c3, %c0_43, %c0_44] : memref<9x8x8xbf16, #tpu.memory_space<vmem>>, vector<1x8x8xbf16>
    %59 = vector.shape_cast %58 : vector<1x8x8xbf16> to vector<8x8xbf16>
    %cst_45 = arith.constant dense<0.000000e+00> : vector<128x8xf32>
    %60 = tpu.matmul %57, %59, %cst_45 {dimension_numbers = #tpu.dot_dimension_numbers<[1], [0], [0], [1], [0, 0, 1, 1], [], []>} : vector<128x8xbf16>, vector<8x8xbf16>, vector<128x8xf32> -> vector<128x8xf32>
    %61 = arith.addf %55, %60 : vector<128x8xf32>
    %62 = vector.extract_strided_slice %33 {offsets = [1, 0, 0], sizes = [8, 16, 8], strides = [1, 1, 1]} : vector<10x16x8xbf16> to vector<8x16x8xbf16>
    %63 = vector.shape_cast %62 : vector<8x16x8xbf16> to vector<128x8xbf16>
    %c4 = arith.constant 4 : index
    %c0_46 = arith.constant 0 : index
    %c0_47 = arith.constant 0 : index
    %64 = vector.load %arg5[%c4, %c0_46, %c0_47] : memref<9x8x8xbf16, #tpu.memory_space<vmem>>, vector<1x8x8xbf16>
    %65 = vector.shape_cast %64 : vector<1x8x8xbf16> to vector<8x8xbf16>
    %cst_48 = arith.constant dense<0.000000e+00> : vector<128x8xf32>
    %66 = tpu.matmul %63, %65, %cst_48 {dimension_numbers = #tpu.dot_dimension_numbers<[1], [0], [0], [1], [0, 0, 1, 1], [], []>} : vector<128x8xbf16>, vector<8x8xbf16>, vector<128x8xf32> -> vector<128x8xf32>
    %67 = arith.addf %61, %66 : vector<128x8xf32>
    %68 = vector.extract_strided_slice %34 {offsets = [1, 0, 0], sizes = [8, 16, 8], strides = [1, 1, 1]} : vector<10x16x8xbf16> to vector<8x16x8xbf16>
    %69 = vector.shape_cast %68 : vector<8x16x8xbf16> to vector<128x8xbf16>
    %c5 = arith.constant 5 : index
    %c0_49 = arith.constant 0 : index
    %c0_50 = arith.constant 0 : index
    %70 = vector.load %arg5[%c5, %c0_49, %c0_50] : memref<9x8x8xbf16, #tpu.memory_space<vmem>>, vector<1x8x8xbf16>
    %71 = vector.shape_cast %70 : vector<1x8x8xbf16> to vector<8x8xbf16>
    %cst_51 = arith.constant dense<0.000000e+00> : vector<128x8xf32>
    %72 = tpu.matmul %69, %71, %cst_51 {dimension_numbers = #tpu.dot_dimension_numbers<[1], [0], [0], [1], [0, 0, 1, 1], [], []>} : vector<128x8xbf16>, vector<8x8xbf16>, vector<128x8xf32> -> vector<128x8xf32>
    %73 = arith.addf %67, %72 : vector<128x8xf32>
    %74 = vector.extract_strided_slice %32 {offsets = [2, 0, 0], sizes = [8, 16, 8], strides = [1, 1, 1]} : vector<10x16x8xbf16> to vector<8x16x8xbf16>
    %75 = vector.shape_cast %74 : vector<8x16x8xbf16> to vector<128x8xbf16>
    %c6 = arith.constant 6 : index
    %c0_52 = arith.constant 0 : index
    %c0_53 = arith.constant 0 : index
    %76 = vector.load %arg5[%c6, %c0_52, %c0_53] : memref<9x8x8xbf16, #tpu.memory_space<vmem>>, vector<1x8x8xbf16>
    %77 = vector.shape_cast %76 : vector<1x8x8xbf16> to vector<8x8xbf16>
    %cst_54 = arith.constant dense<0.000000e+00> : vector<128x8xf32>
    %78 = tpu.matmul %75, %77, %cst_54 {dimension_numbers = #tpu.dot_dimension_numbers<[1], [0], [0], [1], [0, 0, 1, 1], [], []>} : vector<128x8xbf16>, vector<8x8xbf16>, vector<128x8xf32> -> vector<128x8xf32>
    %79 = arith.addf %73, %78 : vector<128x8xf32>
    %80 = vector.extract_strided_slice %33 {offsets = [2, 0, 0], sizes = [8, 16, 8], strides = [1, 1, 1]} : vector<10x16x8xbf16> to vector<8x16x8xbf16>
    %81 = vector.shape_cast %80 : vector<8x16x8xbf16> to vector<128x8xbf16>
    %c7_55 = arith.constant 7 : index
    %c0_56 = arith.constant 0 : index
    %c0_57 = arith.constant 0 : index
    %82 = vector.load %arg5[%c7_55, %c0_56, %c0_57] : memref<9x8x8xbf16, #tpu.memory_space<vmem>>, vector<1x8x8xbf16>
    %83 = vector.shape_cast %82 : vector<1x8x8xbf16> to vector<8x8xbf16>
    %cst_58 = arith.constant dense<0.000000e+00> : vector<128x8xf32>
    %84 = tpu.matmul %81, %83, %cst_58 {dimension_numbers = #tpu.dot_dimension_numbers<[1], [0], [0], [1], [0, 0, 1, 1], [], []>} : vector<128x8xbf16>, vector<8x8xbf16>, vector<128x8xf32> -> vector<128x8xf32>
    %85 = arith.addf %79, %84 : vector<128x8xf32>
    %86 = vector.extract_strided_slice %34 {offsets = [2, 0, 0], sizes = [8, 16, 8], strides = [1, 1, 1]} : vector<10x16x8xbf16> to vector<8x16x8xbf16>
    %87 = vector.shape_cast %86 : vector<8x16x8xbf16> to vector<128x8xbf16>
    %c8_59 = arith.constant 8 : index
    %c0_60 = arith.constant 0 : index
    %c0_61 = arith.constant 0 : index
    %88 = vector.load %arg5[%c8_59, %c0_60, %c0_61] : memref<9x8x8xbf16, #tpu.memory_space<vmem>>, vector<1x8x8xbf16>
    %89 = vector.shape_cast %88 : vector<1x8x8xbf16> to vector<8x8xbf16>
    %cst_62 = arith.constant dense<0.000000e+00> : vector<128x8xf32>
    %90 = tpu.matmul %87, %89, %cst_62 {dimension_numbers = #tpu.dot_dimension_numbers<[1], [0], [0], [1], [0, 0, 1, 1], [], []>} : vector<128x8xbf16>, vector<8x8xbf16>, vector<128x8xf32> -> vector<128x8xf32>
    %91 = arith.addf %85, %90 : vector<128x8xf32>
    %92 = vector.broadcast %35 : vector<1x8xf32> to vector<128x8xf32>
    %93 = arith.addf %91, %92 : vector<128x8xf32>
    %cst_63 = arith.constant 0.000000e+00 : f32
    %94 = vector.broadcast %cst_63 : f32 to vector<128x8xf32>
    %95 = arith.maximumf %93, %94 : vector<128x8xf32>
    %96 = arith.truncf %95 : vector<128x8xf32> to vector<128x8xbf16>
    %c0_64 = arith.constant 0 : index
    %c0_65 = arith.constant 0 : index
    %97 = vector.load %arg7[%c0_64, %c0_65] : memref<8x16xbf16, #tpu.memory_space<vmem>>, vector<8x16xbf16>
    %cst_66 = arith.constant dense<0.000000e+00> : vector<128x16xf32>
    %98 = tpu.matmul %96, %97, %cst_66 {dimension_numbers = #tpu.dot_dimension_numbers<[1], [0], [0], [1], [0, 0, 1, 1], [], []>} : vector<128x8xbf16>, vector<8x16xbf16>, vector<128x16xf32> -> vector<128x16xf32>
    %99 = arith.addf %36, %98 : vector<128x16xf32>
    %c0_67 = arith.constant 0 : index
    %c0_68 = arith.constant 0 : index
    %100 = vector.load %arg8[%c0_67, %c0_68] : memref<1x16xf32, #tpu.memory_space<vmem>>, vector<1x16xf32>
    %101 = vector.broadcast %100 : vector<1x16xf32> to vector<128x16xf32>
    %102 = arith.addf %99, %101 : vector<128x16xf32>
    %103 = arith.truncf %16 : vector<128x4xf32> to vector<128x4xbf16>
    %c0_69 = arith.constant 0 : index
    %c0_70 = arith.constant 0 : index
    %104 = vector.load %arg9[%c0_69, %c0_70] : memref<4x16xbf16, #tpu.memory_space<vmem>>, vector<4x16xbf16>
    %cst_71 = arith.constant dense<0.000000e+00> : vector<128x16xf32>
    %105 = tpu.matmul %103, %104, %cst_71 {dimension_numbers = #tpu.dot_dimension_numbers<[1], [0], [0], [1], [0, 0, 1, 1], [], []>} : vector<128x4xbf16>, vector<4x16xbf16>, vector<128x16xf32> -> vector<128x16xf32>
    %c0_72 = arith.constant 0 : index
    %c0_73 = arith.constant 0 : index
    %106 = vector.load %arg10[%c0_72, %c0_73] : memref<1x16xf32, #tpu.memory_space<vmem>>, vector<1x16xf32>
    %107 = vector.broadcast %106 : vector<1x16xf32> to vector<128x16xf32>
    %108 = arith.addf %105, %107 : vector<128x16xf32>
    %109 = arith.addf %102, %108 : vector<128x16xf32>
    %cst_74 = arith.constant 0.000000e+00 : f32
    %110 = vector.broadcast %cst_74 : f32 to vector<128x16xf32>
    %111 = arith.maximumf %109, %110 : vector<128x16xf32>
    %112 = vector.shape_cast %111 : vector<128x16xf32> to vector<1x8x16x16xf32>
    %c0_75 = arith.constant 0 : index
    %c0_76 = arith.constant 0 : index
    %c0_77 = arith.constant 0 : index
    %c0_78 = arith.constant 0 : index
    %113 = vector.load %arg11[%c0_75, %c0_76, %c0_77, %c0_78] : memref<1x8x16x16xf32, #tpu.memory_space<vmem>>, vector<1x8x16x16xf32>
    tpu.vector_store %arg11[%c0_75, %c0_76, %c0_77, %c0_78], %112 {strides = array<i32>} : memref<1x8x16x16xf32, #tpu.memory_space<vmem>>, vector<1x8x16x16xf32>,
    return
  }
  func.func @transform_0(%arg0: i32, %arg1: i32) -> (i32, i32, i32, i32) {
    %c0_i32 = arith.constant 0 : i32
    %c0_i32_0 = arith.constant 0 : i32
    %c0_i32_1 = arith.constant 0 : i32
    %c0_i32_2 = arith.constant 0 : i32
    return %arg0, %c0_i32, %c0_i32_0, %c0_i32_1 : i32, i32, i32, i32
  }
  func.func @transform_1(%arg0: i32, %arg1: i32) -> (i32, i32) {
    %c0_i32 = arith.constant 0 : i32
    %c0_i32_0 = arith.constant 0 : i32
    %c0_i32_1 = arith.constant 0 : i32
    return %c0_i32, %c0_i32_0 : i32, i32
  }
  func.func @transform_2(%arg0: i32, %arg1: i32) -> (i32, i32) {
    %c0_i32 = arith.constant 0 : i32
    %c0_i32_0 = arith.constant 0 : i32
    %c0_i32_1 = arith.constant 0 : i32
    return %c0_i32, %c0_i32_0 : i32, i32
  }
  func.func @transform_3(%arg0: i32, %arg1: i32) -> (i32, i32, i32) {
    %c0_i32 = arith.constant 0 : i32
    %c0_i32_0 = arith.constant 0 : i32
    %c0_i32_1 = arith.constant 0 : i32
    %c0_i32_2 = arith.constant 0 : i32
    return %c0_i32, %c0_i32_0, %c0_i32_1 : i32, i32, i32
  }
  func.func @transform_4(%arg0: i32, %arg1: i32) -> (i32, i32) {
    %c0_i32 = arith.constant 0 : i32
    %c0_i32_0 = arith.constant 0 : i32
    %c0_i32_1 = arith.constant 0 : i32
    return %c0_i32, %c0_i32_0 : i32, i32
  }
  func.func @transform_5(%arg0: i32, %arg1: i32) -> (i32, i32) {
    %c0_i32 = arith.constant 0 : i32
    %c0_i32_0 = arith.constant 0 : i32
    %c0_i32_1 = arith.constant 0 : i32
    return %c0_i32, %c0_i32_0 : i32, i32
  }
  func.func @transform_6(%arg0: i32, %arg1: i32) -> (i32, i32) {
    %c0_i32 = arith.constant 0 : i32
    %c0_i32_0 = arith.constant 0 : i32
    %c0_i32_1 = arith.constant 0 : i32
    return %c0_i32, %c0_i32_0 : i32, i32
  }
  func.func @transform_7(%arg0: i32, %arg1: i32) -> (i32, i32) {
    %c0_i32 = arith.constant 0 : i32
    %c0_i32_0 = arith.constant 0 : i32
    %c0_i32_1 = arith.constant 0 : i32
    return %c0_i32, %c0_i32_0 : i32, i32
  }
  func.func @transform_8(%arg0: i32, %arg1: i32) -> (i32, i32) {
    %c0_i32 = arith.constant 0 : i32
    %c0_i32_0 = arith.constant 0 : i32
    %c0_i32_1 = arith.constant 0 : i32
    return %c0_i32, %c0_i32_0 : i32, i32
  }
  func.func @transform_9(%arg0: i32, %arg1: i32) -> (i32, i32, i32, i32) {
    %c0_i32 = arith.constant 0 : i32
    %c0_i32_0 = arith.constant 0 : i32
    %c0_i32_1 = arith.constant 0 : i32
    return %arg0, %arg1, %c0_i32, %c0_i32_0 : i32, i32, i32, i32
  }
}

</mosaic_0001>

<llo_original>
// kernel: tpu_custom_call.1
$region0: #{tpu_custom_call.1}
  #allocation0 [shape = 'u32[]', space=smem, size = 0x4, offset = 0x4, fixed_abs, tag = 'smem constant byte address 0x4 - core index']
  #allocation1 [shape = 'u32[144,128]{1,0:T(1,128)}', space=vmem, size = 0x12000, scoped, tag = 'internal scratch']
  #allocation2 [shape = 'bf16[10,32,8]{2,1,0:T(16,128)(2,1)}', space=vmem, size = 0x14000, scoped, tag = 'scratch operand']
  %s0 = inlined_call_operand.vmem [shape: f32[2,16,16,4], index: 0, kind: input, shape index: {}]
  %s1 = inlined_call_operand.vmem [shape: bf16[4,8], index: 1, kind: input, shape index: {}]
  %s2 = inlined_call_operand.vmem [shape: f32[1,8], index: 2, kind: input, shape index: {}]
  %s3 = inlined_call_operand.vmem [shape: bf16[9,8,8], index: 3, kind: input, shape index: {}]
  %s4 = inlined_call_operand.vmem [shape: f32[1,8], index: 4, kind: input, shape index: {}]
  %s5 = inlined_call_operand.vmem [shape: bf16[8,16], index: 5, kind: input, shape index: {}]
  %s6 = inlined_call_operand.vmem [shape: f32[1,16], index: 6, kind: input, shape index: {}]
  %s7 = inlined_call_operand.vmem [shape: bf16[4,16], index: 7, kind: input, shape index: {}]
  %s8 = inlined_call_operand.vmem [shape: f32[1,16], index: 8, kind: input, shape index: {}]
  %s9 = inlined_call_operand.hbm [shape: f32[2,16,16,16], index: 9, kind: output, shape index: {}]
  %s10 = sld [smem:[#allocation0]]
  $region85: #{tpu_custom_call.1} parent=0
    _
  %s12 = ssub.s32 1, %s10
  %s13 = scalar_select 0, %s12, %s10
  $region1: #{tpu_custom_call.1} parent=0
    #allocation3 [shape = 'u8[131072]{0}', space=vmem, size = 0x20000, scoped, tag = 'output window, operand 0']
    #allocation4 [shape = 's32[2]{0}', space=sflag, size = 0x8, scoped, tag = 'scoped memory for tpu_custom_call.1']
    %14 = vsyncpa [#allocation4], 0
    %s15 = scalar_lea.sflag [#allocation4], 1
    %16 = vsyncpa %s15, 0
    loop: start=0, step=1, limit=6
    $region2: #{tpu_custom_call.1} parent=1 // loop_pre_header
      _
    $region3: #{tpu_custom_call.1} parent=1 // loop_header
      %s18 = sphi 0, %s22
      %p19 = scmp.ge.s32.totalorder %s18, 6
      %s25 = sphi 0, %s37
      %s26 = sphi 0, %s33
      %s27 = sphi 0, %s25
      %s28 = sphi 0, %s26
      %s29 = sphi 0, %s27
      %s30 = sphi 0, %s28
      %s40 = sphi 0, %s42
      %s43 = sphi 0, %s40
      %s44 = sphi 0, %s43
      %s60 = sphi 0, %s44
      %s64 = sphi 0, %s64
      %s66 = sphi 0, %s64
      %s67 = sphi 0, %s66
      %s81 = sphi 0, %s67
      %s85 = sphi 0, %s85
      %s87 = sphi 0, %s85
      %s88 = sphi 0, %s87
      %s102 = sphi 0, %s88
      %s106 = sphi 0, %s106
      %s108 = sphi 0, %s106
      %s109 = sphi 0, %s108
      %s123 = sphi 0, %s109
      %s127 = sphi 0, %s127
      %s129 = sphi 0, %s127
      %s130 = sphi 0, %s129
      %s144 = sphi 0, %s130
      %s148 = sphi 0, %s148
      %s150 = sphi 0, %s148
      %s151 = sphi 0, %s150
      %s165 = sphi 0, %s151
      %s169 = sphi 0, %s169
      %s171 = sphi 0, %s169
      %s172 = sphi 0, %s171
      %s186 = sphi 0, %s172
      %s190 = sphi 0, %s190
      %s192 = sphi 0, %s190
      %s193 = sphi 0, %s192
      %s207 = sphi 0, %s193
      %s211 = sphi 0, %s211
      %s213 = sphi 0, %s211
      %s214 = sphi 0, %s213
      %s228 = sphi 0, %s214
      %s236 = sphi 0, %s238
      %s239 = sphi 0, %s236
      %s240 = sphi 0, %s239
      %s256 = sphi 0, %s240
    $region4: #{tpu_custom_call.1} parent=1 // loop_header_branch
      %21 = sbr.rel (%p19) target = $region8
    $region5: #{tpu_custom_call.1} parent=1 // loop_body
      %s23 = ssub.s32 %s18, 1
      %s24 = ssub.s32 %s18, 2
      %s31 = sadd.s32 1, %s26
      %p32 = scmp.ge.s32.totalorder %s31, 2
      %s33 = scalar_select %p32, 0, %s31
      %s34 = sadd.s32 1, %s25
      %s35 = scalar_select %p32, %s34, %s25
      %p36 = scmp.ge.s32.totalorder %s35, 2
      %s37 = scalar_select %p36, 0, %s35
      %s38 = ssub.s32 %s25, %s37
      %p39 = scmp.eq.s32.totalorder %s38, 0
      %s41 = sadd.s32 %s40, 1
      %s42 = scalar_select %p39, %s40, %s41
      %p45 = pneg %p39
      %p46 = scmp.eq.s32.totalorder %s18, 3
      %p47 = por %p45, %p46
      %p48 = scmp.ne.s32.totalorder %s40, %s43
      %p49 = scmp.eq.s32.totalorder %s18, 0
      %p50 = por %p48, %p49
      %p51 = scmp.ne.s32.totalorder %s40, %s43
      %p52 = scmp.eq.s32.totalorder %s23, 3
      %p53 = por %p51, %p52
      %p54 = scmp.ne.s32.totalorder %s43, %s44
      %p55 = scmp.eq.s32.totalorder %s23, 0
      %p56 = por %p54, %p55
      %p57 = scmp.ne.s32.totalorder %s43, %s44
      %p58 = scmp.eq.s32.totalorder %s24, 3
      %p59 = por %p57, %p58
      %p61 = scmp.ne.s32.totalorder %s44, %s60
      %p62 = scmp.eq.s32.totalorder %s24, 0
      %p63 = por %p61, %p62
      %s65 = sadd.s32 %s64, 1
      %p68 = scmp.eq.s32.totalorder %s18, 3
      %p69 = scmp.ne.s32.totalorder %s64, %s66
      %p70 = scmp.eq.s32.totalorder %s18, 0
      %p71 = por %p69, %p70
      %p72 = scmp.ne.s32.totalorder %s64, %s66
      %p73 = scmp.eq.s32.totalorder %s23, 3
      %p74 = por %p72, %p73
      %p75 = scmp.ne.s32.totalorder %s66, %s67
      %p76 = scmp.eq.s32.totalorder %s23, 0
      %p77 = por %p75, %p76
      %p78 = scmp.ne.s32.totalorder %s66, %s67
      %p79 = scmp.eq.s32.totalorder %s24, 3
      %p80 = por %p78, %p79
      %p82 = scmp.ne.s32.totalorder %s67, %s81
      %p83 = scmp.eq.s32.totalorder %s24, 0
      %p84 = por %p82, %p83
      %s86 = sadd.s32 %s85, 1
      %p89 = scmp.eq.s32.totalorder %s18, 3
      %p90 = scmp.ne.s32.totalorder %s85, %s87
      %p91 = scmp.eq.s32.totalorder %s18, 0
      %p92 = por %p90, %p91
      %p93 = scmp.ne.s32.totalorder %s85, %s87
      %p94 = scmp.eq.s32.totalorder %s23, 3
      %p95 = por %p93, %p94
      %p96 = scmp.ne.s32.totalorder %s87, %s88
      %p97 = scmp.eq.s32.totalorder %s23, 0
      %p98 = por %p96, %p97
      %p99 = scmp.ne.s32.totalorder %s87, %s88
      %p100 = scmp.eq.s32.totalorder %s24, 3
      %p101 = por %p99, %p100
      %p103 = scmp.ne.s32.totalorder %s88, %s102
      %p104 = scmp.eq.s32.totalorder %s24, 0
      %p105 = por %p103, %p104
      %s107 = sadd.s32 %s106, 1
      %p110 = scmp.eq.s32.totalorder %s18, 3
      %p111 = scmp.ne.s32.totalorder %s106, %s108
      %p112 = scmp.eq.s32.totalorder %s18, 0
      %p113 = por %p111, %p112
      %p114 = scmp.ne.s32.totalorder %s106, %s108
      %p115 = scmp.eq.s32.totalorder %s23, 3
      %p116 = por %p114, %p115
      %p117 = scmp.ne.s32.totalorder %s108, %s109
      %p118 = scmp.eq.s32.totalorder %s23, 0
      %p119 = por %p117, %p118
      %p120 = scmp.ne.s32.totalorder %s108, %s109
      %p121 = scmp.eq.s32.totalorder %s24, 3
      %p122 = por %p120, %p121
      %p124 = scmp.ne.s32.totalorder %s109, %s123
      %p125 = scmp.eq.s32.totalorder %s24, 0
      %p126 = por %p124, %p125
      %s128 = sadd.s32 %s127, 1
      %p131 = scmp.eq.s32.totalorder %s18, 3
      %p132 = scmp.ne.s32.totalorder %s127, %s129
      %p133 = scmp.eq.s32.totalorder %s18, 0
      %p134 = por %p132, %p133
      %p135 = scmp.ne.s32.totalorder %s127, %s129
      %p136 = scmp.eq.s32.totalorder %s23, 3
      %p137 = por %p135, %p136
      %p138 = scmp.ne.s32.totalorder %s129, %s130
      %p139 = scmp.eq.s32.totalorder %s23, 0
      %p140 = por %p138, %p139
      %p141 = scmp.ne.s32.totalorder %s129, %s130
      %p142 = scmp.eq.s32.totalorder %s24, 3
      %p143 = por %p141, %p142
      %p145 = scmp.ne.s32.totalorder %s130, %s144
      %p146 = scmp.eq.s32.totalorder %s24, 0
      %p147 = por %p145, %p146
      %s149 = sadd.s32 %s148, 1
      %p152 = scmp.eq.s32.totalorder %s18, 3
      %p153 = scmp.ne.s32.totalorder %s148, %s150
      %p154 = scmp.eq.s32.totalorder %s18, 0
      %p155 = por %p153, %p154
      %p156 = scmp.ne.s32.totalorder %s148, %s150
      %p157 = scmp.eq.s32.totalorder %s23, 3
      %p158 = por %p156, %p157
      %p159 = scmp.ne.s32.totalorder %s150, %s151
      %p160 = scmp.eq.s32.totalorder %s23, 0
      %p161 = por %p159, %p160
      %p162 = scmp.ne.s32.totalorder %s150, %s151
      %p163 = scmp.eq.s32.totalorder %s24, 3
      %p164 = por %p162, %p163
      %p166 = scmp.ne.s32.totalorder %s151, %s165
      %p167 = scmp.eq.s32.totalorder %s24, 0
      %p168 = por %p166, %p167
      %s170 = sadd.s32 %s169, 1
      %p173 = scmp.eq.s32.totalorder %s18, 3
      %p174 = scmp.ne.s32.totalorder %s169, %s171
      %p175 = scmp.eq.s32.totalorder %s18, 0
      %p176 = por %p174, %p175
      %p177 = scmp.ne.s32.totalorder %s169, %s171
      %p178 = scmp.eq.s32.totalorder %s23, 3
      %p179 = por %p177, %p178
      %p180 = scmp.ne.s32.totalorder %s171, %s172
      %p181 = scmp.eq.s32.totalorder %s23, 0
      %p182 = por %p180, %p181
      %p183 = scmp.ne.s32.totalorder %s171, %s172
      %p184 = scmp.eq.s32.totalorder %s24, 3
      %p185 = por %p183, %p184
      %p187 = scmp.ne.s32.totalorder %s172, %s186
      %p188 = scmp.eq.s32.totalorder %s24, 0
      %p189 = por %p187, %p188
      %s191 = sadd.s32 %s190, 1
      %p194 = scmp.eq.s32.totalorder %s18, 3
      %p195 = scmp.ne.s32.totalorder %s190, %s192
      %p196 = scmp.eq.s32.totalorder %s18, 0
      %p197 = por %p195, %p196
      %p198 = scmp.ne.s32.totalorder %s190, %s192
      %p199 = scmp.eq.s32.totalorder %s23, 3
      %p200 = por %p198, %p199
      %p201 = scmp.ne.s32.totalorder %s192, %s193
      %p202 = scmp.eq.s32.totalorder %s23, 0
      %p203 = por %p201, %p202
      %p204 = scmp.ne.s32.totalorder %s192, %s193
      %p205 = scmp.eq.s32.totalorder %s24, 3
      %p206 = por %p204, %p205
      %p208 = scmp.ne.s32.totalorder %s193, %s207
      %p209 = scmp.eq.s32.totalorder %s24, 0
      %p210 = por %p208, %p209
      %s212 = sadd.s32 %s211, 1
      %p215 = scmp.eq.s32.totalorder %s18, 3
      %p216 = scmp.ne.s32.totalorder %s211, %s213
      %p217 = scmp.eq.s32.totalorder %s18, 0
      %p218 = por %p216, %p217
      %p219 = scmp.ne.s32.totalorder %s211, %s213
      %p220 = scmp.eq.s32.totalorder %s23, 3
      %p221 = por %p219, %p220
      %p222 = scmp.ne.s32.totalorder %s213, %s214
      %p223 = scmp.eq.s32.totalorder %s23, 0
      %p224 = por %p222, %p223
      %p225 = scmp.ne.s32.totalorder %s213, %s214
      %p226 = scmp.eq.s32.totalorder %s24, 3
      %p227 = por %p225, %p226
      %p229 = scmp.ne.s32.totalorder %s214, %s228
      %p230 = scmp.eq.s32.totalorder %s24, 0
      %p231 = por %p229, %p230
      %s232 = ssub.s32 %s25, %s37
      %s233 = ssub.s32 %s26, %s33
      %s234 = sor.u32 %s232, %s233
      %p235 = scmp.eq.s32.totalorder %s234, 0
      %s237 = sadd.s32 %s236, 1
      %s238 = scalar_select %p235, %s236, %s237
      %p241 = pneg %p235
      %p242 = scmp.eq.s32.totalorder %s18, 3
      %p243 = por %p241, %p242
      %p244 = scmp.ne.s32.totalorder %s236, %s239
      %p245 = scmp.eq.s32.totalorder %s18, 0
      %p246 = por %p244, %p245
      %p247 = scmp.ne.s32.totalorder %s236, %s239
      %p248 = scmp.eq.s32.totalorder %s23, 3
      %p249 = por %p247, %p248
      %p250 = scmp.ne.s32.totalorder %s239, %s240
      %p251 = scmp.eq.s32.totalorder %s23, 0
      %p252 = por %p250, %p251
      %p253 = scmp.ne.s32.totalorder %s239, %s240
      %p254 = scmp.eq.s32.totalorder %s24, 3
      %p255 = por %p253, %p254
      %p257 = scmp.ne.s32.totalorder %s240, %s256
      %p258 = scmp.eq.s32.totalorder %s24, 0
      %p259 = por %p257, %p258
      %p260 = scmp.le.s32.totalorder 1, %s18
      %p261 = scmp.lt.s32.totalorder %s18, 5
      %p262 = pnand %p260, %p261
      %p263 = pneg %p262
      // Predicated region
      $region9: #{tpu_custom_call.1} parent=5 // pred_check
        _
      $region10: #{tpu_custom_call.1} parent=5 // pred_check_branch
        %265 = sbr.rel (%p262) target = $region12
      $region11: #{tpu_custom_call.1} parent=5 // pred_region
        %s266 = ssub.s32 %s18, 1
        // Predicated region
        $region13: #{tpu_custom_call.1} parent=11 // pred_check
          %p267 = pneg %p77
        $region14: #{tpu_custom_call.1} parent=11 // pred_check_branch
          %269 = sbr.rel (%p267) target = $region16
        $region15: #{tpu_custom_call.1} parent=11 // pred_region
          _
        $region16: #{tpu_custom_call.1} parent=11 // pred_fallthru
          _
        // Predicated region
        $region17: #{tpu_custom_call.1} parent=11 // pred_check
          %p270 = pneg %p98
        $region18: #{tpu_custom_call.1} parent=11 // pred_check_branch
          %272 = sbr.rel (%p270) target = $region20
        $region19: #{tpu_custom_call.1} parent=11 // pred_region
          _
        $region20: #{tpu_custom_call.1} parent=11 // pred_fallthru
          _
        // Predicated region
        $region21: #{tpu_custom_call.1} parent=11 // pred_check
          %p273 = pneg %p119
        $region22: #{tpu_custom_call.1} parent=11 // pred_check_branch
          %275 = sbr.rel (%p273) target = $region24
        $region23: #{tpu_custom_call.1} parent=11 // pred_region
          _
        $region24: #{tpu_custom_call.1} parent=11 // pred_fallthru
          _
        // Predicated region
        $region25: #{tpu_custom_call.1} parent=11 // pred_check
          %p276 = pneg %p140
        $region26: #{tpu_custom_call.1} parent=11 // pred_check_branch
          %278 = sbr.rel (%p276) target = $region28
        $region27: #{tpu_custom_call.1} parent=11 // pred_region
          _
        $region28: #{tpu_custom_call.1} parent=11 // pred_fallthru
          _
        // Predicated region
        $region29: #{tpu_custom_call.1} parent=11 // pred_check
          %p279 = pneg %p161
        $region30: #{tpu_custom_call.1} parent=11 // pred_check_branch
          %281 = sbr.rel (%p279) target = $region32
        $region31: #{tpu_custom_call.1} parent=11 // pred_region
          _
        $region32: #{tpu_custom_call.1} parent=11 // pred_fallthru
          _
        // Predicated region
        $region33: #{tpu_custom_call.1} parent=11 // pred_check
          %p282 = pneg %p182
        $region34: #{tpu_custom_call.1} parent=11 // pred_check_branch
          %284 = sbr.rel (%p282) target = $region36
        $region35: #{tpu_custom_call.1} parent=11 // pred_region
          _
        $region36: #{tpu_custom_call.1} parent=11 // pred_fallthru
          _
        // Predicated region
        $region37: #{tpu_custom_call.1} parent=11 // pred_check
          %p285 = pneg %p203
        $region38: #{tpu_custom_call.1} parent=11 // pred_check_branch
          %287 = sbr.rel (%p285) target = $region40
        $region39: #{tpu_custom_call.1} parent=11 // pred_region
          _
        $region40: #{tpu_custom_call.1} parent=11 // pred_fallthru
          _
        // Predicated region
        $region41: #{tpu_custom_call.1} parent=11 // pred_check
          %p288 = pneg %p224
        $region42: #{tpu_custom_call.1} parent=11 // pred_check_branch
          %290 = sbr.rel (%p288) target = $region44
        $region43: #{tpu_custom_call.1} parent=11 // pred_region
          _
        $region44: #{tpu_custom_call.1} parent=11 // pred_fallthru
          _
      $region12: #{tpu_custom_call.1} parent=5 // pred_fallthru
        _
      %p291 = scmp.lt.s32.totalorder %s18, 4
      // Predicated region
      $region45: #{tpu_custom_call.1} parent=5 // pred_check
        %p292 = pneg %p291
      $region46: #{tpu_custom_call.1} parent=5 // pred_check_branch
        %294 = sbr.rel (%p292) target = $region48
      $region47: #{tpu_custom_call.1} parent=5 // pred_region
        // Predicated region
        $region49: #{tpu_custom_call.1} parent=47 // pred_check
          %p295 = pneg %p50
        $region50: #{tpu_custom_call.1} parent=47 // pred_check_branch
          %297 = sbr.rel (%p295) target = $region52
        $region51: #{tpu_custom_call.1} parent=47 // pred_region
          %p298 = scmp.lt.s32.totalorder %s25, 1
          %s299 = scalar_select %p298, %s25, 1
          %s300 = smul.addr %s299, 32
          %s301 = smul.addr %s300, 8
          %s302 = scalar_lea.vmem %s0, %s301
        $region52: #{tpu_custom_call.1} parent=47 // pred_fallthru
          _
      $region48: #{tpu_custom_call.1} parent=5 // pred_fallthru
        _
      %p303 = scmp.le.s32.totalorder 1, %s18
      %p304 = scmp.lt.s32.totalorder %s18, 5
      %p305 = pnand %p303, %p304
      %p306 = pneg %p305
      // Predicated region
      $region53: #{tpu_custom_call.1} parent=5 // pred_check
        _
      $region54: #{tpu_custom_call.1} parent=5 // pred_check_branch
        %308 = sbr.rel (%p305) target = $region56
      $region55: #{tpu_custom_call.1} parent=5 // pred_region
        %s309 = ssub.s32 %s18, 1
        %p310 = scmp.lt.s32.totalorder %s27, 1
        %s311 = scalar_select %p310, %s27, 1
        %s312 = smul.addr %s311, 32
        %s313 = smul.addr %s312, 8
        %s314 = scalar_lea.vmem %s0, %s313
        %p315 = pneg %p56
        %p316 = pneg %p53
        %p317 = pneg %p77
        %p318 = pneg %p74
        %p319 = pneg %p98
        %p320 = pneg %p95
        %p321 = pneg %p119
        %p322 = pneg %p116
        %p323 = pneg %p140
        %p324 = pneg %p137
        %p325 = pneg %p161
        %p326 = pneg %p158
        %p327 = pneg %p182
        %p328 = pneg %p179
        %p329 = pneg %p203
        %p330 = pneg %p200
        %p331 = pneg %p224
        %p332 = pneg %p221
        %p333 = pneg %p252
        %p334 = pneg %p249
        %s335 = sand.u32 %s239, 1
        %s336 = scalar_lea.sflag [#allocation4], %s335
        %s337 = sand.u32 %s239, 1
        %s338 = smul.addr %s337, 128
        %s339 = scalar_lea.vmem [#allocation3], %s338
        %p340 = scmp.lt.s32.totalorder %s27, 1
        %s341 = scalar_select %p340, %s27, 1
        %s342 = smul.addr %s341, 32
        %s343 = smul.addr %s342, 8
        %s344 = scalar_lea.vmem %s0, %s343
        %s345 = smul.u32 8, %s28
        %s347 = smul.u32 %s28, 8
        %vm348 = vcmask 60416
        %349 = vst.msk [vmem:[#allocation2] sm:$0xf] %vm348, 0
        %350 = vst.msk [vmem:[#allocation2 + $0x10] sm:$0xf] %vm348, 0
        %351 = vst.msk [vmem:[#allocation2 + $0x20] sm:$0xf] %vm348, 0
        %352 = vst.msk [vmem:[#allocation2 + $0x30] sm:$0xf] %vm348, 0
        %353 = vst.msk [vmem:[#allocation2 + $0x40] sm:$0xf] %vm348, 0
        %354 = vst.msk [vmem:[#allocation2 + $0x50] sm:$0xf] %vm348, 0
        %355 = vst.msk [vmem:[#allocation2 + $0x60] sm:$0xf] %vm348, 0
        %356 = vst.msk [vmem:[#allocation2 + $0x70] sm:$0xf] %vm348, 0
        %357 = vst.msk [vmem:[#allocation2 + $0x80] sm:$0xf] %vm348, 0
        %358 = vst.msk [vmem:[#allocation2 + $0x90] sm:$0xf] %vm348, 0
        %vm359 = vcmask 64516
        %360 = vst.msk [vmem:[#allocation2 + $0x8] sm:$0xf0] %vm359, 0
        %361 = vst.msk [vmem:[#allocation2 + $0x18] sm:$0xf0] %vm359, 0
        %362 = vst.msk [vmem:[#allocation2 + $0x28] sm:$0xf0] %vm359, 0
        %363 = vst.msk [vmem:[#allocation2 + $0x38] sm:$0xf0] %vm359, 0
        %364 = vst.msk [vmem:[#allocation2 + $0x48] sm:$0xf0] %vm359, 0
        %365 = vst.msk [vmem:[#allocation2 + $0x58] sm:$0xf0] %vm359, 0
        %366 = vst.msk [vmem:[#allocation2 + $0x68] sm:$0xf0] %vm359, 0
        %367 = vst.msk [vmem:[#allocation2 + $0x78] sm:$0xf0] %vm359, 0
        %368 = vst.msk [vmem:[#allocation2 + $0x88] sm:$0xf0] %vm359, 0
        %369 = vst.msk [vmem:[#allocation2 + $0x98] sm:$0xf0] %vm359, 0
        %p370 = scmp.eq.s32.totalorder %s28, 0
        // Predicated region
        $region57: #{tpu_custom_call.1} parent=55 // pred_check
          %p371 = pneg %p370
        $region58: #{tpu_custom_call.1} parent=55 // pred_check_branch
          %373 = sbr.rel (%p371) target = $region60
        $region59: #{tpu_custom_call.1} parent=55 // pred_region
          %vm374 = vcmask 64512
          %375 = vst.msk [vmem:[#allocation2] sm:$0xff] %vm374, 0
          %376 = vst.msk [vmem:[#allocation2 + $0x8] sm:$0xff] %vm374, 0
        $region60: #{tpu_custom_call.1} parent=55 // pred_fallthru
          _
        %p377 = scmp.eq.s32.totalorder %s28, 1
        // Predicated region
        $region61: #{tpu_custom_call.1} parent=55 // pred_check
          %p378 = pneg %p377
        $region62: #{tpu_custom_call.1} parent=55 // pred_check_branch
          %380 = sbr.rel (%p378) target = $region64
        $region63: #{tpu_custom_call.1} parent=55 // pred_region
          %s381 = scalar_lea.vmem [#allocation2], 144
          %vm382 = vcmask 64512
          %383 = vst.msk [vmem:[%s381] sm:$0xff] %vm382, 0
          %384 = vst.msk [vmem:[%s381 + $0x8] sm:$0xff] %vm382, 0
        $region64: #{tpu_custom_call.1} parent=55 // pred_fallthru
          _
        %v385 = vld [vmem:[%s1] sm:$0x3]
        %v386 = vld [vmem:[%s2] sm:$0x1]
        %s387 = smul.u32 %s347, 16
        %s388 = scalar_lea.vmem %s344, %s387
        %v389 = vld [vmem:[%s388] sm:$0xff]
        %v390 = vld [vmem:[%s388 + $0x8] sm:$0xff]
        %v391 = vld [vmem:[%s388 + $0x10] sm:$0xff]
        %v392 = vld [vmem:[%s388 + $0x18] sm:$0xff]
        %v393 = vld [vmem:[%s388 + $0x20] sm:$0xff]
        %v394 = vld [vmem:[%s388 + $0x28] sm:$0xff]
        %v395 = vld [vmem:[%s388 + $0x30] sm:$0xff]
        %v396 = vld [vmem:[%s388 + $0x38] sm:$0xff]
        %v397 = vld [vmem:[%s388 + $0x40] sm:$0xff]
        %v398 = vld [vmem:[%s388 + $0x48] sm:$0xff]
        %v399 = vld [vmem:[%s388 + $0x50] sm:$0xff]
        %v400 = vld [vmem:[%s388 + $0x58] sm:$0xff]
        %v401 = vld [vmem:[%s388 + $0x60] sm:$0xff]
        %v402 = vld [vmem:[%s388 + $0x68] sm:$0xff]
        %v403 = vld [vmem:[%s388 + $0x70] sm:$0xff]
        %v404 = vld [vmem:[%s388 + $0x78] sm:$0xff]
        %v405 = vpack.c.bf16 %v390, %v389
        %v406 = vpack.c.bf16 %v392, %v391
        %v407 = vpack.c.bf16 %v394, %v393
        %v408 = vpack.c.bf16 %v396, %v395
        %v409 = vpack.c.bf16 %v398, %v397
        %v410 = vpack.c.bf16 %v400, %v399
        %v411 = vpack.c.bf16 %v402, %v401
        %v412 = vpack.c.bf16 %v404, %v403
        %v414 = vlaneseq
        %v415 = vshrl.u32 %v414, 7
        %v416 = vsub.s32 0, %v415
        %v417 = vrot.slane %v386, %v416
        %vm419 = vcmask 31744
        %v421 = vsel %vm419, %v405, 0
        %v424 = vsel %vm419, %v406, 0
        %v427 = vsel %vm419, %v407, 0
        %v430 = vsel %vm419, %v408, 0
        %v433 = vsel %vm419, %v409, 0
        %v436 = vsel %vm419, %v410, 0
        %v439 = vsel %vm419, %v411, 0
        %v442 = vsel %vm419, %v412, 0
        %vm444 = vcmask 1041408
        %v446 = vsel %vm444, %v385, 0
        %448 = vmatprep.subr.bf16.mxu0 0
        %449 = vmatpush1.bf16.msra.mxu0 %v446
        %450 = vmatprep.subr.bf16.mxu0 0
        %451 = vmatpush1.bf16.msra.mxu0 0
        %452 = vmatprep.subr.bf16.mxu0 0
        %453 = vmatpush1.bf16.msra.mxu0 0
        %454 = vmatprep.subr.bf16.mxu0 0
        %455 = vmatpush1.bf16.msra.mxu0 0
        %456 = vmatprep.subr.bf16.mxu0 0
        %457 = vmatpush1.bf16.msra.mxu0 0
        %458 = vmatprep.subr.bf16.mxu0 0
        %459 = vmatpush1.bf16.msra.mxu0 0
        %460 = vmatprep.subr.bf16.mxu0 0
        %461 = vmatpush1.bf16.msra.mxu0 0
        %462 = vmatprep.subr.bf16.mxu0 0
        %463 = vmatpush1.bf16.msra.mxu0 0
        %464 = vmatprep.subr.bf16.mxu0 0
        %465 = vmatpush1.bf16.msra.mxu0 0
        %466 = vmatprep.subr.bf16.mxu0 0
        %467 = vmatpush1.bf16.msra.mxu0 0
        %468 = vmatprep.subr.bf16.mxu0 0
        %469 = vmatpush1.bf16.msra.mxu0 0
        %470 = vmatprep.subr.bf16.mxu0 0
        %471 = vmatpush1.bf16.msra.mxu0 0
        %472 = vmatprep.subr.bf16.mxu0 0
        %473 = vmatpush1.bf16.msra.mxu0 0
        %474 = vmatprep.subr.bf16.mxu0 0
        %475 = vmatpush1.bf16.msra.mxu0 0
        %476 = vmatprep.subr.bf16.mxu0 0
        %477 = vmatpush1.bf16.msra.mxu0 0
        %478 = vmatprep.subr.bf16.mxu0 0
        %479 = vmatpush1.bf16.msra.mxu0 0
        %480 = vmatprep.mubr.bf16.mxu0 0
        %481 = vmatmul.mubr.bf16.gmra.mrb[0].mxu0 %v421
        %v482 = vpop.f32.mrb[0].mxu0
        %v483 = vadd.f32 %v417, %v482
        %v484 = vpop.f32.mrb[0].mxu0
        %v485 = vpop.f32.mrb[0].mxu0
        %v486 = vadd.f32 %v417, %v485
        %v487 = vpop.f32.mrb[0].mxu0
        %488 = vmatprep.mubr.bf16.mxu0 0
        %489 = vmatmul.mubr.bf16.gmra.mrb[0].mxu0 %v424
        %v490 = vpop.f32.mrb[0].mxu0
        %v491 = vadd.f32 %v417, %v490
        %v492 = vpop.f32.mrb[0].mxu0
        %v493 = vpop.f32.mrb[0].mxu0
        %v494 = vadd.f32 %v417, %v493
        %v495 = vpop.f32.mrb[0].mxu0
        %496 = vmatprep.mubr.bf16.mxu0 0
        %497 = vmatmul.mubr.bf16.gmra.mrb[0].mxu0 %v427
        %v498 = vpop.f32.mrb[0].mxu0
        %v499 = vadd.f32 %v417, %v498
        %v500 = vpop.f32.mrb[0].mxu0
        %v501 = vpop.f32.mrb[0].mxu0
        %v502 = vadd.f32 %v417, %v501
        %v503 = vpop.f32.mrb[0].mxu0
        %504 = vmatprep.mubr.bf16.mxu0 0
        %505 = vmatmul.mubr.bf16.gmra.mrb[0].mxu0 %v430
        %v506 = vpop.f32.mrb[0].mxu0
        %v507 = vadd.f32 %v417, %v506
        %v508 = vpop.f32.mrb[0].mxu0
        %v509 = vpop.f32.mrb[0].mxu0
        %v510 = vadd.f32 %v417, %v509
        %v511 = vpop.f32.mrb[0].mxu0
        %512 = vmatprep.mubr.bf16.mxu0 0
        %513 = vmatmul.mubr.bf16.gmra.mrb[0].mxu0 %v433
        %v514 = vpop.f32.mrb[0].mxu0
        %v515 = vadd.f32 %v417, %v514
        %v516 = vpop.f32.mrb[0].mxu0
        %v517 = vpop.f32.mrb[0].mxu0
        %v518 = vadd.f32 %v417, %v517
        %v519 = vpop.f32.mrb[0].mxu0
        %520 = vmatprep.mubr.bf16.mxu0 0
        %521 = vmatmul.mubr.bf16.gmra.mrb[0].mxu0 %v436
        %v522 = vpop.f32.mrb[0].mxu0
        %v523 = vadd.f32 %v417, %v522
        %v524 = vpop.f32.mrb[0].mxu0
        %v525 = vpop.f32.mrb[0].mxu0
        %v526 = vadd.f32 %v417, %v525
        %v527 = vpop.f32.mrb[0].mxu0
        %528 = vmatprep.mubr.bf16.mxu0 0
        %529 = vmatmul.mubr.bf16.gmra.mrb[0].mxu0 %v439
        %v530 = vpop.f32.mrb[0].mxu0
        %v531 = vadd.f32 %v417, %v530
        %v532 = vpop.f32.mrb[0].mxu0
        %v533 = vpop.f32.mrb[0].mxu0
        %v534 = vadd.f32 %v417, %v533
        %v535 = vpop.f32.mrb[0].mxu0
        %536 = vmatprep.mubr.bf16.mxu0 0
        %537 = vmatmul.mubr.bf16.gmra.mrb[0].mxu0 %v442
        %v538 = vpop.f32.mrb[0].mxu0
        %v539 = vadd.f32 %v417, %v538
        %v540 = vpop.f32.mrb[0].mxu0
        %v541 = vpop.f32.mrb[0].mxu0
        %v542 = vadd.f32 %v417, %v541
        %v543 = vpop.f32.mrb[0].mxu0
        %544 = vdwg.mxu0
        %v545 = vmax.f32 %v483, 0.0
        %v546 = vmax.f32 %v486, 0.0
        %v547 = vmax.f32 %v491, 0.0
        %v548 = vmax.f32 %v494, 0.0
        %v549 = vmax.f32 %v499, 0.0
        %v550 = vmax.f32 %v502, 0.0
        %v551 = vmax.f32 %v507, 0.0
        %v552 = vmax.f32 %v510, 0.0
        %v553 = vmax.f32 %v515, 0.0
        %v554 = vmax.f32 %v518, 0.0
        %v555 = vmax.f32 %v523, 0.0
        %v556 = vmax.f32 %v526, 0.0
        %v557 = vmax.f32 %v531, 0.0
        %v558 = vmax.f32 %v534, 0.0
        %v559 = vmax.f32 %v539, 0.0
        %v560 = vmax.f32 %v542, 0.0
        %v561 = vpack.c.bf16 %v546, %v545
        %v562 = vpack.c.bf16 %v548, %v547
        %v563 = vpack.c.bf16 %v550, %v549
        %v564 = vpack.c.bf16 %v552, %v551
        %v565 = vpack.c.bf16 %v554, %v553
        %v566 = vpack.c.bf16 %v556, %v555
        %v567 = vpack.c.bf16 %v558, %v557
        %v568 = vpack.c.bf16 %v560, %v559
        %v577 = vrot.slane %v561, 4
        %v578 = vrot.slane %v562, 4
        %v579 = vrot.slane %v563, 4
        %v580 = vrot.slane %v564, 4
        %v581 = vrot.slane %v565, 4
        %v582 = vrot.slane %v566, 4
        %v583 = vrot.slane %v567, 4
        %v584 = vrot.slane %v568, 4
        %s593 = scalar_lea.vmem [#allocation2], 16
        %594 = vst.msk [vmem:[%s593] sm:$0xf0] %vm359, %v577
        %595 = vst.msk [vmem:[%s593 + $0x8] sm:$0xf] %vm348, %v577
        %596 = vst.msk [vmem:[%s593 + $0x10] sm:$0xf0] %vm359, %v578
        %597 = vst.msk [vmem:[%s593 + $0x18] sm:$0xf] %vm348, %v578
        %598 = vst.msk [vmem:[%s593 + $0x20] sm:$0xf0] %vm359, %v579
        %599 = vst.msk [vmem:[%s593 + $0x28] sm:$0xf] %vm348, %v579
        %600 = vst.msk [vmem:[%s593 + $0x30] sm:$0xf0] %vm359, %v580
        %601 = vst.msk [vmem:[%s593 + $0x38] sm:$0xf] %vm348, %v580
        %602 = vst.msk [vmem:[%s593 + $0x40] sm:$0xf0] %vm359, %v581
        %603 = vst.msk [vmem:[%s593 + $0x48] sm:$0xf] %vm348, %v581
        %604 = vst.msk [vmem:[%s593 + $0x50] sm:$0xf0] %vm359, %v582
        %605 = vst.msk [vmem:[%s593 + $0x58] sm:$0xf] %vm348, %v582
        %606 = vst.msk [vmem:[%s593 + $0x60] sm:$0xf0] %vm359, %v583
        %607 = vst.msk [vmem:[%s593 + $0x68] sm:$0xf] %vm348, %v583
        %608 = vst.msk [vmem:[%s593 + $0x70] sm:$0xf0] %vm359, %v584
        %609 = vst.msk [vmem:[%s593 + $0x78] sm:$0xf] %vm348, %v584
        %p610 = scmp.gt.s32.totalorder %s28, 0
        // Predicated region
        $region65: #{tpu_custom_call.1} parent=55 // pred_check
          %p611 = pneg %p610
        $region66: #{tpu_custom_call.1} parent=55 // pred_check_branch
          %613 = sbr.rel (%p611) target = $region68
        $region67: #{tpu_custom_call.1} parent=55 // pred_region
          %s614 = ssub.s32 %s347, 1
          %s615 = smul.u32 %s614, 16
          %s616 = scalar_lea.vmem %s344, %s615
          %v617 = vld [vmem:[%s616] sm:$0xff]
          %v618 = vld [vmem:[%s616 + $0x8] sm:$0xff]
          %v619 = vpack.c.bf16 %v618, %v617
          %v621 = vsel %vm419, %v619, 0
          %623 = vmatprep.subr.bf16.mxu0 0
          %624 = vmatpush1.bf16.msra.mxu0 %v446
          %625 = vmatprep.subr.bf16.mxu0 0
          %626 = vmatpush1.bf16.msra.mxu0 0
          %627 = vmatprep.subr.bf16.mxu0 0
          %628 = vmatpush1.bf16.msra.mxu0 0
          %629 = vmatprep.subr.bf16.mxu0 0
          %630 = vmatpush1.bf16.msra.mxu0 0
          %631 = vmatprep.subr.bf16.mxu0 0
          %632 = vmatpush1.bf16.msra.mxu0 0
          %633 = vmatprep.subr.bf16.mxu0 0
          %634 = vmatpush1.bf16.msra.mxu0 0
          %635 = vmatprep.subr.bf16.mxu0 0
          %636 = vmatpush1.bf16.msra.mxu0 0
          %637 = vmatprep.subr.bf16.mxu0 0
          %638 = vmatpush1.bf16.msra.mxu0 0
          %639 = vmatprep.subr.bf16.mxu0 0
          %640 = vmatpush1.bf16.msra.mxu0 0
          %641 = vmatprep.subr.bf16.mxu0 0
          %642 = vmatpush1.bf16.msra.mxu0 0
          %643 = vmatprep.subr.bf16.mxu0 0
          %644 = vmatpush1.bf16.msra.mxu0 0
          %645 = vmatprep.subr.bf16.mxu0 0
          %646 = vmatpush1.bf16.msra.mxu0 0
          %647 = vmatprep.subr.bf16.mxu0 0
          %648 = vmatpush1.bf16.msra.mxu0 0
          %649 = vmatprep.subr.bf16.mxu0 0
          %650 = vmatpush1.bf16.msra.mxu0 0
          %651 = vmatprep.subr.bf16.mxu0 0
          %652 = vmatpush1.bf16.msra.mxu0 0
          %653 = vmatprep.subr.bf16.mxu0 0
          %654 = vmatpush1.bf16.msra.mxu0 0
          %655 = vmatprep.mubr.bf16.mxu0 0
          %656 = vmatmul.mubr.bf16.gmra.mrb[0].mxu0 %v621
          %v657 = vpop.f32.mrb[0].mxu0
          %v658 = vadd.f32 %v417, %v657
          %v659 = vpop.f32.mrb[0].mxu0
          %v660 = vpop.f32.mrb[0].mxu0
          %v661 = vadd.f32 %v417, %v660
          %v662 = vpop.f32.mrb[0].mxu0
          %663 = vdwg.mxu0
          %v664 = vmax.f32 %v658, 0.0
          %v665 = vmax.f32 %v661, 0.0
          %v666 = vpack.c.bf16 %v665, %v664
          %v668 = vrot.slane %v666, 4
          %670 = vst.msk [vmem:[#allocation2] sm:$0xf0] %vm359, %v668
          %671 = vst.msk [vmem:[#allocation2 + $0x8] sm:$0xf] %vm348, %v668
        $region68: #{tpu_custom_call.1} parent=55 // pred_fallthru
          _
        %p672 = scmp.lt.s32.totalorder %s28, 1
        // Predicated region
        $region69: #{tpu_custom_call.1} parent=55 // pred_check
          %p673 = pneg %p672
        $region70: #{tpu_custom_call.1} parent=55 // pred_check_branch
          %675 = sbr.rel (%p673) target = $region72
        $region71: #{tpu_custom_call.1} parent=55 // pred_region
          %s676 = sadd.s32 %s347, 8
          %s677 = smul.u32 %s676, 16
          %s678 = scalar_lea.vmem %s344, %s677
          %v679 = vld [vmem:[%s678] sm:$0xff]
          %v680 = vld [vmem:[%s678 + $0x8] sm:$0xff]
          %v681 = vpack.c.bf16 %v680, %v679
          %v683 = vsel %vm419, %v681, 0
          %685 = vmatprep.subr.bf16.mxu0 0
          %686 = vmatpush1.bf16.msra.mxu0 %v446
          %687 = vmatprep.subr.bf16.mxu0 0
          %688 = vmatpush1.bf16.msra.mxu0 0
          %689 = vmatprep.subr.bf16.mxu0 0
          %690 = vmatpush1.bf16.msra.mxu0 0
          %691 = vmatprep.subr.bf16.mxu0 0
          %692 = vmatpush1.bf16.msra.mxu0 0
          %693 = vmatprep.subr.bf16.mxu0 0
          %694 = vmatpush1.bf16.msra.mxu0 0
          %695 = vmatprep.subr.bf16.mxu0 0
          %696 = vmatpush1.bf16.msra.mxu0 0
          %697 = vmatprep.subr.bf16.mxu0 0
          %698 = vmatpush1.bf16.msra.mxu0 0
          %699 = vmatprep.subr.bf16.mxu0 0
          %700 = vmatpush1.bf16.msra.mxu0 0
          %701 = vmatprep.subr.bf16.mxu0 0
          %702 = vmatpush1.bf16.msra.mxu0 0
          %703 = vmatprep.subr.bf16.mxu0 0
          %704 = vmatpush1.bf16.msra.mxu0 0
          %705 = vmatprep.subr.bf16.mxu0 0
          %706 = vmatpush1.bf16.msra.mxu0 0
          %707 = vmatprep.subr.bf16.mxu0 0
          %708 = vmatpush1.bf16.msra.mxu0 0
          %709 = vmatprep.subr.bf16.mxu0 0
          %710 = vmatpush1.bf16.msra.mxu0 0
          %711 = vmatprep.subr.bf16.mxu0 0
          %712 = vmatpush1.bf16.msra.mxu0 0
          %713 = vmatprep.subr.bf16.mxu0 0
          %714 = vmatpush1.bf16.msra.mxu0 0
          %715 = vmatprep.subr.bf16.mxu0 0
          %716 = vmatpush1.bf16.msra.mxu0 0
          %717 = vmatprep.mubr.bf16.mxu0 0
          %718 = vmatmul.mubr.bf16.gmra.mrb[0].mxu0 %v683
          %v719 = vpop.f32.mrb[0].mxu0
          %v720 = vadd.f32 %v417, %v719
          %v721 = vpop.f32.mrb[0].mxu0
          %v722 = vpop.f32.mrb[0].mxu0
          %v723 = vadd.f32 %v417, %v722
          %v724 = vpop.f32.mrb[0].mxu0
          %725 = vdwg.mxu0
          %v726 = vmax.f32 %v720, 0.0
          %v727 = vmax.f32 %v723, 0.0
          %v728 = vpack.c.bf16 %v727, %v726
          %v730 = vrot.slane %v728, 4
          %s732 = scalar_lea.vmem [#allocation2], 144
          %733 = vst.msk [vmem:[%s732] sm:$0xf0] %vm359, %v730
          %734 = vst.msk [vmem:[%s732 + $0x8] sm:$0xf] %vm348, %v730
        $region72: #{tpu_custom_call.1} parent=55 // pred_fallthru
          _
        %v735 = vld [vmem:[#allocation2] sm:$0xf8]
        %v736 = vld [vmem:[#allocation2 + $0x8] sm:$0xf]
        %v737 = vld [vmem:[#allocation2 + $0x10] sm:$0xf8]
        %v738 = vld [vmem:[#allocation2 + $0x18] sm:$0xf]
        %v739 = vld [vmem:[#allocation2 + $0x20] sm:$0xf8]
        %v740 = vld [vmem:[#allocation2 + $0x28] sm:$0xf]
        %v741 = vld [vmem:[#allocation2 + $0x30] sm:$0xf8]
        %v742 = vld [vmem:[#allocation2 + $0x38] sm:$0xf]
        %v743 = vld [vmem:[#allocation2 + $0x40] sm:$0xf8]
        %v744 = vld [vmem:[#allocation2 + $0x48] sm:$0xf]
        %v745 = vld [vmem:[#allocation2 + $0x50] sm:$0xf8]
        %v746 = vld [vmem:[#allocation2 + $0x58] sm:$0xf]
        %v747 = vld [vmem:[#allocation2 + $0x60] sm:$0xf8]
        %v748 = vld [vmem:[#allocation2 + $0x68] sm:$0xf]
        %v749 = vld [vmem:[#allocation2 + $0x70] sm:$0xf8]
        %v750 = vld [vmem:[#allocation2 + $0x78] sm:$0xf]
        %v751 = vld [vmem:[#allocation2 + $0x80] sm:$0xf8]
        %v752 = vld [vmem:[#allocation2 + $0x88] sm:$0xf]
        %v753 = vld [vmem:[#allocation2 + $0x90] sm:$0xf8]
        %v754 = vld [vmem:[#allocation2 + $0x98] sm:$0xf]
        %v755 = vld [vmem:[#allocation2] sm:$0xf0]
        %v756 = vld [vmem:[#allocation2 + $0x10] sm:$0xf0]
        %v757 = vld [vmem:[#allocation2 + $0x20] sm:$0xf0]
        %v758 = vld [vmem:[#allocation2 + $0x30] sm:$0xf0]
        %v759 = vld [vmem:[#allocation2 + $0x40] sm:$0xf0]
        %v760 = vld [vmem:[#allocation2 + $0x50] sm:$0xf0]
        %v761 = vld [vmem:[#allocation2 + $0x60] sm:$0xf0]
        %v762 = vld [vmem:[#allocation2 + $0x70] sm:$0xf0]
        %v763 = vld [vmem:[#allocation2 + $0x80] sm:$0xf0]
        %v764 = vld [vmem:[#allocation2 + $0x90] sm:$0xf0]
        %v765 = vld [vmem:[#allocation2 + $0x8] sm:$0x1f]
        %v766 = vld [vmem:[#allocation2 + $0x18] sm:$0x1f]
        %v767 = vld [vmem:[#allocation2 + $0x28] sm:$0x1f]
        %v768 = vld [vmem:[#allocation2 + $0x38] sm:$0x1f]
        %v769 = vld [vmem:[#allocation2 + $0x48] sm:$0x1f]
        %v770 = vld [vmem:[#allocation2 + $0x58] sm:$0x1f]
        %v771 = vld [vmem:[#allocation2 + $0x68] sm:$0x1f]
        %v772 = vld [vmem:[#allocation2 + $0x78] sm:$0x1f]
        %v773 = vld [vmem:[#allocation2 + $0x88] sm:$0x1f]
        %v774 = vld [vmem:[#allocation2 + $0x98] sm:$0x1f]
        %v775 = vld [vmem:[%s4] sm:$0x1]
        %vm776 = vsmask.f32 4352
        %v778 = vshrl.u32 %v735, 16
        %v780 = vrot.slane %v778, 3
        %v781 = vshll.u32 %v735, 16
        %v783 = vrot.slane %v781, 4
        %v784 = vor.u32 %v780, %v783
        %v786 = vshrl.u32 %v736, 16
        %v788 = vrot.slane %v786, 3
        %v789 = vshll.u32 %v736, 16
        %v791 = vrot.slane %v789, 4
        %v792 = vor.u32 %v788, %v791
        %v793 = vsel %vm776, %v784, %v792
        %v795 = vshrl.u32 %v737, 16
        %v797 = vrot.slane %v795, 3
        %v798 = vshll.u32 %v737, 16
        %v800 = vrot.slane %v798, 4
        %v801 = vor.u32 %v797, %v800
        %v803 = vshrl.u32 %v738, 16
        %v805 = vrot.slane %v803, 3
        %v806 = vshll.u32 %v738, 16
        %v808 = vrot.slane %v806, 4
        %v809 = vor.u32 %v805, %v808
        %v810 = vsel %vm776, %v801, %v809
        %v812 = vshrl.u32 %v739, 16
        %v814 = vrot.slane %v812, 3
        %v815 = vshll.u32 %v739, 16
        %v817 = vrot.slane %v815, 4
        %v818 = vor.u32 %v814, %v817
        %v820 = vshrl.u32 %v740, 16
        %v822 = vrot.slane %v820, 3
        %v823 = vshll.u32 %v740, 16
        %v825 = vrot.slane %v823, 4
        %v826 = vor.u32 %v822, %v825
        %v827 = vsel %vm776, %v818, %v826
        %v829 = vshrl.u32 %v741, 16
        %v831 = vrot.slane %v829, 3
        %v832 = vshll.u32 %v741, 16
        %v834 = vrot.slane %v832, 4
        %v835 = vor.u32 %v831, %v834
        %v837 = vshrl.u32 %v742, 16
        %v839 = vrot.slane %v837, 3
        %v840 = vshll.u32 %v742, 16
        %v842 = vrot.slane %v840, 4
        %v843 = vor.u32 %v839, %v842
        %v844 = vsel %vm776, %v835, %v843
        %v846 = vshrl.u32 %v743, 16
        %v848 = vrot.slane %v846, 3
        %v849 = vshll.u32 %v743, 16
        %v851 = vrot.slane %v849, 4
        %v852 = vor.u32 %v848, %v851
        %v854 = vshrl.u32 %v744, 16
        %v856 = vrot.slane %v854, 3
        %v857 = vshll.u32 %v744, 16
        %v859 = vrot.slane %v857, 4
        %v860 = vor.u32 %v856, %v859
        %v861 = vsel %vm776, %v852, %v860
        %v863 = vshrl.u32 %v745, 16
        %v865 = vrot.slane %v863, 3
        %v866 = vshll.u32 %v745, 16
        %v868 = vrot.slane %v866, 4
        %v869 = vor.u32 %v865, %v868
        %v871 = vshrl.u32 %v746, 16
        %v873 = vrot.slane %v871, 3
        %v874 = vshll.u32 %v746, 16
        %v876 = vrot.slane %v874, 4
        %v877 = vor.u32 %v873, %v876
        %v878 = vsel %vm776, %v869, %v877
        %v880 = vshrl.u32 %v747, 16
        %v882 = vrot.slane %v880, 3
        %v883 = vshll.u32 %v747, 16
        %v885 = vrot.slane %v883, 4
        %v886 = vor.u32 %v882, %v885
        %v888 = vshrl.u32 %v748, 16
        %v890 = vrot.slane %v888, 3
        %v891 = vshll.u32 %v748, 16
        %v893 = vrot.slane %v891, 4
        %v894 = vor.u32 %v890, %v893
        %v895 = vsel %vm776, %v886, %v894
        %v897 = vshrl.u32 %v749, 16
        %v899 = vrot.slane %v897, 3
        %v900 = vshll.u32 %v749, 16
        %v902 = vrot.slane %v900, 4
        %v903 = vor.u32 %v899, %v902
        %v905 = vshrl.u32 %v750, 16
        %v907 = vrot.slane %v905, 3
        %v908 = vshll.u32 %v750, 16
        %v910 = vrot.slane %v908, 4
        %v911 = vor.u32 %v907, %v910
        %v912 = vsel %vm776, %v903, %v911
        %v913 = vld [vmem:[%s3] sm:$0xf]
        %vm930 = vcmask 1043456
        %v931 = vrot.slane %v755, 4
        %v932 = vrot.slane %v736, 4
        %v933 = vsel %vm930, %v931, %v932
        %v934 = vrot.slane %v756, 4
        %v935 = vrot.slane %v738, 4
        %v936 = vsel %vm930, %v934, %v935
        %v937 = vrot.slane %v757, 4
        %v938 = vrot.slane %v740, 4
        %v939 = vsel %vm930, %v937, %v938
        %v940 = vrot.slane %v758, 4
        %v941 = vrot.slane %v742, 4
        %v942 = vsel %vm930, %v940, %v941
        %v943 = vrot.slane %v759, 4
        %v944 = vrot.slane %v744, 4
        %v945 = vsel %vm930, %v943, %v944
        %v946 = vrot.slane %v760, 4
        %v947 = vrot.slane %v746, 4
        %v948 = vsel %vm930, %v946, %v947
        %v949 = vrot.slane %v761, 4
        %v950 = vrot.slane %v748, 4
        %v951 = vsel %vm930, %v949, %v950
        %v952 = vrot.slane %v762, 4
        %v953 = vrot.slane %v750, 4
        %v954 = vsel %vm930, %v952, %v953
        %s955 = scalar_lea.vmem %s3, 4
        %v956 = vld [vmem:[%s955] sm:$0xf]
        %vm957 = vcmask 64512
        %v959 = vsel %vm957, %v933, 0
        %v962 = vsel %vm957, %v936, 0
        %v965 = vsel %vm957, %v939, 0
        %v968 = vsel %vm957, %v942, 0
        %v971 = vsel %vm957, %v945, 0
        %v974 = vsel %vm957, %v948, 0
        %v977 = vsel %vm957, %v951, 0
        %v980 = vsel %vm957, %v954, 0
        %vm982 = vcmask 1043456
        %v984 = vsel %vm982, %v956, 0
        %986 = vmatprep.subr.bf16.mxu0 0
        %987 = vmatpush1.bf16.msra.mxu0 %v984
        %988 = vmatprep.subr.bf16.mxu0 0
        %989 = vmatpush1.bf16.msra.mxu0 0
        %990 = vmatprep.subr.bf16.mxu0 0
        %991 = vmatpush1.bf16.msra.mxu0 0
        %992 = vmatprep.subr.bf16.mxu0 0
        %993 = vmatpush1.bf16.msra.mxu0 0
        %994 = vmatprep.subr.bf16.mxu0 0
        %995 = vmatpush1.bf16.msra.mxu0 0
        %996 = vmatprep.subr.bf16.mxu0 0
        %997 = vmatpush1.bf16.msra.mxu0 0
        %998 = vmatprep.subr.bf16.mxu0 0
        %999 = vmatpush1.bf16.msra.mxu0 0
        %1000 = vmatprep.subr.bf16.mxu0 0
        %1001 = vmatpush1.bf16.msra.mxu0 0
        %1002 = vmatprep.subr.bf16.mxu0 0
        %1003 = vmatpush1.bf16.msra.mxu0 0
        %1004 = vmatprep.subr.bf16.mxu0 0
        %1005 = vmatpush1.bf16.msra.mxu0 0
        %1006 = vmatprep.subr.bf16.mxu0 0
        %1007 = vmatpush1.bf16.msra.mxu0 0
        %1008 = vmatprep.subr.bf16.mxu0 0
        %1009 = vmatpush1.bf16.msra.mxu0 0
        %1010 = vmatprep.subr.bf16.mxu0 0
        %1011 = vmatpush1.bf16.msra.mxu0 0
        %1012 = vmatprep.subr.bf16.mxu0 0
        %1013 = vmatpush1.bf16.msra.mxu0 0
        %1014 = vmatprep.subr.bf16.mxu0 0
        %1015 = vmatpush1.bf16.msra.mxu0 0
        %1016 = vmatprep.subr.bf16.mxu0 0
        %1017 = vmatpush1.bf16.msra.mxu0 0
        %1018 = vmatprep.mubr.bf16.mxu0 0
        %1019 = vmatmul.mubr.bf16.gmra.mrb[0].mxu0 %v959
        %v1020 = vpop.f32.mrb[0].mxu0
        %v1021 = vadd.f32 0.0, %v1020
        %v1022 = vpop.f32.mrb[0].mxu0
        %v1023 = vpop.f32.mrb[0].mxu0
        %v1024 = vadd.f32 0.0, %v1023
        %v1025 = vpop.f32.mrb[0].mxu0
        %1026 = vmatprep.mubr.bf16.mxu0 0
        %1027 = vmatmul.mubr.bf16.gmra.mrb[0].mxu0 %v962
        %v1028 = vpop.f32.mrb[0].mxu0
        %v1029 = vadd.f32 0.0, %v1028
        %v1030 = vpop.f32.mrb[0].mxu0
        %v1031 = vpop.f32.mrb[0].mxu0
        %v1032 = vadd.f32 0.0, %v1031
        %v1033 = vpop.f32.mrb[0].mxu0
        %1034 = vmatprep.mubr.bf16.mxu0 0
        %1035 = vmatmul.mubr.bf16.gmra.mrb[0].mxu0 %v965
        %v1036 = vpop.f32.mrb[0].mxu0
        %v1037 = vadd.f32 0.0, %v1036
        %v1038 = vpop.f32.mrb[0].mxu0
        %v1039 = vpop.f32.mrb[0].mxu0
        %v1040 = vadd.f32 0.0, %v1039
        %v1041 = vpop.f32.mrb[0].mxu0
        %1042 = vmatprep.mubr.bf16.mxu0 0
        %1043 = vmatmul.mubr.bf16.gmra.mrb[0].mxu0 %v968
        %v1044 = vpop.f32.mrb[0].mxu0
        %v1045 = vadd.f32 0.0, %v1044
        %v1046 = vpop.f32.mrb[0].mxu0
        %v1047 = vpop.f32.mrb[0].mxu0
        %v1048 = vadd.f32 0.0, %v1047
        %v1049 = vpop.f32.mrb[0].mxu0
        %1050 = vmatprep.mubr.bf16.mxu0 0
        %1051 = vmatmul.mubr.bf16.gmra.mrb[0].mxu0 %v971
        %v1052 = vpop.f32.mrb[0].mxu0
        %v1053 = vadd.f32 0.0, %v1052
        %v1054 = vpop.f32.mrb[0].mxu0
        %v1055 = vpop.f32.mrb[0].mxu0
        %v1056 = vadd.f32 0.0, %v1055
        %v1057 = vpop.f32.mrb[0].mxu0
        %1058 = vmatprep.mubr.bf16.mxu0 0
        %1059 = vmatmul.mubr.bf16.gmra.mrb[0].mxu0 %v974
        %v1060 = vpop.f32.mrb[0].mxu0
        %v1061 = vadd.f32 0.0, %v1060
        %v1062 = vpop.f32.mrb[0].mxu0
        %v1063 = vpop.f32.mrb[0].mxu0
        %v1064 = vadd.f32 0.0, %v1063
        %v1065 = vpop.f32.mrb[0].mxu0
        %1066 = vmatprep.mubr.bf16.mxu0 0
        %1067 = vmatmul.mubr.bf16.gmra.mrb[0].mxu0 %v977
        %v1068 = vpop.f32.mrb[0].mxu0
        %v1069 = vadd.f32 0.0, %v1068
        %v1070 = vpop.f32.mrb[0].mxu0
        %v1071 = vpop.f32.mrb[0].mxu0
        %v1072 = vadd.f32 0.0, %v1071
        %v1073 = vpop.f32.mrb[0].mxu0
        %1074 = vmatprep.mubr.bf16.mxu0 0
        %1075 = vmatmul.mubr.bf16.gmra.mrb[0].mxu0 %v980
        %v1076 = vpop.f32.mrb[0].mxu0
        %v1077 = vadd.f32 0.0, %v1076
        %v1078 = vpop.f32.mrb[0].mxu0
        %v1079 = vpop.f32.mrb[0].mxu0
        %v1080 = vadd.f32 0.0, %v1079
        %v1081 = vpop.f32.mrb[0].mxu0
        %1082 = vdwg.mxu0
        %v1084 = vsel %vm957, %v793, 0
        %v1087 = vsel %vm957, %v810, 0
        %v1090 = vsel %vm957, %v827, 0
        %v1093 = vsel %vm957, %v844, 0
        %v1096 = vsel %vm957, %v861, 0
        %v1099 = vsel %vm957, %v878, 0
        %v1102 = vsel %vm957, %v895, 0
        %v1105 = vsel %vm957, %v912, 0
        %v1108 = vsel %vm982, %v913, 0
        %1110 = vmatprep.subr.bf16.mxu0 0
        %1111 = vmatpush1.bf16.msra.mxu0 %v1108
        %1112 = vmatprep.subr.bf16.mxu0 0
        %1113 = vmatpush1.bf16.msra.mxu0 0
        %1114 = vmatprep.subr.bf16.mxu0 0
        %1115 = vmatpush1.bf16.msra.mxu0 0
        %1116 = vmatprep.subr.bf16.mxu0 0
        %1117 = vmatpush1.bf16.msra.mxu0 0
        %1118 = vmatprep.subr.bf16.mxu0 0
        %1119 = vmatpush1.bf16.msra.mxu0 0
        %1120 = vmatprep.subr.bf16.mxu0 0
        %1121 = vmatpush1.bf16.msra.mxu0 0
        %1122 = vmatprep.subr.bf16.mxu0 0
        %1123 = vmatpush1.bf16.msra.mxu0 0
        %1124 = vmatprep.subr.bf16.mxu0 0
        %1125 = vmatpush1.bf16.msra.mxu0 0
        %1126 = vmatprep.subr.bf16.mxu0 0
        %1127 = vmatpush1.bf16.msra.mxu0 0
        %1128 = vmatprep.subr.bf16.mxu0 0
        %1129 = vmatpush1.bf16.msra.mxu0 0
        %1130 = vmatprep.subr.bf16.mxu0 0
        %1131 = vmatpush1.bf16.msra.mxu0 0
        %1132 = vmatprep.subr.bf16.mxu0 0
        %1133 = vmatpush1.bf16.msra.mxu0 0
        %1134 = vmatprep.subr.bf16.mxu0 0
        %1135 = vmatpush1.bf16.msra.mxu0 0
        %1136 = vmatprep.subr.bf16.mxu0 0
        %1137 = vmatpush1.bf16.msra.mxu0 0
        %1138 = vmatprep.subr.bf16.mxu0 0
        %1139 = vmatpush1.bf16.msra.mxu0 0
        %1140 = vmatprep.subr.bf16.mxu0 0
        %1141 = vmatpush1.bf16.msra.mxu0 0
        %1142 = vmatprep.mubr.bf16.mxu0 0
        %1143 = vmatmul.mubr.bf16.gmra.mrb[0].mxu0 %v1084
        %v1144 = vpop.f32.mrb[0].mxu0
        %v1145 = vadd.f32 %v1021, %v1144
        %v1146 = vpop.f32.mrb[0].mxu0
        %v1147 = vpop.f32.mrb[0].mxu0
        %v1148 = vadd.f32 %v1024, %v1147
        %v1149 = vpop.f32.mrb[0].mxu0
        %1150 = vmatprep.mubr.bf16.mxu0 0
        %1151 = vmatmul.mubr.bf16.gmra.mrb[0].mxu0 %v1087
        %v1152 = vpop.f32.mrb[0].mxu0
        %v1153 = vadd.f32 %v1029, %v1152
        %v1154 = vpop.f32.mrb[0].mxu0
        %v1155 = vpop.f32.mrb[0].mxu0
        %v1156 = vadd.f32 %v1032, %v1155
        %v1157 = vpop.f32.mrb[0].mxu0
        %1158 = vmatprep.mubr.bf16.mxu0 0
        %1159 = vmatmul.mubr.bf16.gmra.mrb[0].mxu0 %v1090
        %v1160 = vpop.f32.mrb[0].mxu0
        %v1161 = vadd.f32 %v1037, %v1160
        %v1162 = vpop.f32.mrb[0].mxu0
        %v1163 = vpop.f32.mrb[0].mxu0
        %v1164 = vadd.f32 %v1040, %v1163
        %v1165 = vpop.f32.mrb[0].mxu0
        %1166 = vmatprep.mubr.bf16.mxu0 0
        %1167 = vmatmul.mubr.bf16.gmra.mrb[0].mxu0 %v1093
        %v1168 = vpop.f32.mrb[0].mxu0
        %v1169 = vadd.f32 %v1045, %v1168
        %v1170 = vpop.f32.mrb[0].mxu0
        %v1171 = vpop.f32.mrb[0].mxu0
        %v1172 = vadd.f32 %v1048, %v1171
        %v1173 = vpop.f32.mrb[0].mxu0
        %1174 = vmatprep.mubr.bf16.mxu0 0
        %1175 = vmatmul.mubr.bf16.gmra.mrb[0].mxu0 %v1096
        %v1176 = vpop.f32.mrb[0].mxu0
        %v1177 = vadd.f32 %v1053, %v1176
        %v1178 = vpop.f32.mrb[0].mxu0
        %v1179 = vpop.f32.mrb[0].mxu0
        %v1180 = vadd.f32 %v1056, %v1179
        %v1181 = vpop.f32.mrb[0].mxu0
        %1182 = vmatprep.mubr.bf16.mxu0 0
        %1183 = vmatmul.mubr.bf16.gmra.mrb[0].mxu0 %v1099
        %v1184 = vpop.f32.mrb[0].mxu0
        %v1185 = vadd.f32 %v1061, %v1184
        %v1186 = vpop.f32.mrb[0].mxu0
        %v1187 = vpop.f32.mrb[0].mxu0
        %v1188 = vadd.f32 %v1064, %v1187
        %v1189 = vpop.f32.mrb[0].mxu0
        %1190 = vmatprep.mubr.bf16.mxu0 0
        %1191 = vmatmul.mubr.bf16.gmra.mrb[0].mxu0 %v1102
        %v1192 = vpop.f32.mrb[0].mxu0
        %v1193 = vadd.f32 %v1069, %v1192
        %v1194 = vpop.f32.mrb[0].mxu0
        %v1195 = vpop.f32.mrb[0].mxu0
        %v1196 = vadd.f32 %v1072, %v1195
        %v1197 = vpop.f32.mrb[0].mxu0
        %1198 = vmatprep.mubr.bf16.mxu0 0
        %1199 = vmatmul.mubr.bf16.gmra.mrb[0].mxu0 %v1105
        %v1200 = vpop.f32.mrb[0].mxu0
        %v1201 = vadd.f32 %v1077, %v1200
        %v1202 = vpop.f32.mrb[0].mxu0
        %v1203 = vpop.f32.mrb[0].mxu0
        %v1204 = vadd.f32 %v1080, %v1203
        %v1205 = vpop.f32.mrb[0].mxu0
        %1206 = vdwg.mxu0
        %vm1207 = vsmask.f32 3328
        %v1209 = vshrl.u32 %v755, 16
        %v1211 = vrot.slane %v1209, 4
        %v1212 = vshll.u32 %v755, 16
        %v1214 = vrot.slane %v1212, 5
        %v1215 = vor.u32 %v1211, %v1214
        %v1217 = vshrl.u32 %v765, 16
        %v1219 = vrot.slane %v1217, 4
        %v1220 = vshll.u32 %v765, 16
        %v1222 = vrot.slane %v1220, 5
        %v1223 = vor.u32 %v1219, %v1222
        %v1224 = vsel %vm1207, %v1215, %v1223
        %v1226 = vshrl.u32 %v756, 16
        %v1228 = vrot.slane %v1226, 4
        %v1229 = vshll.u32 %v756, 16
        %v1231 = vrot.slane %v1229, 5
        %v1232 = vor.u32 %v1228, %v1231
        %v1234 = vshrl.u32 %v766, 16
        %v1236 = vrot.slane %v1234, 4
        %v1237 = vshll.u32 %v766, 16
        %v1239 = vrot.slane %v1237, 5
        %v1240 = vor.u32 %v1236, %v1239
        %v1241 = vsel %vm1207, %v1232, %v1240
        %v1243 = vshrl.u32 %v757, 16
        %v1245 = vrot.slane %v1243, 4
        %v1246 = vshll.u32 %v757, 16
        %v1248 = vrot.slane %v1246, 5
        %v1249 = vor.u32 %v1245, %v1248
        %v1251 = vshrl.u32 %v767, 16
        %v1253 = vrot.slane %v1251, 4
        %v1254 = vshll.u32 %v767, 16
        %v1256 = vrot.slane %v1254, 5
        %v1257 = vor.u32 %v1253, %v1256
        %v1258 = vsel %vm1207, %v1249, %v1257
        %v1260 = vshrl.u32 %v758, 16
        %v1262 = vrot.slane %v1260, 4
        %v1263 = vshll.u32 %v758, 16
        %v1265 = vrot.slane %v1263, 5
        %v1266 = vor.u32 %v1262, %v1265
        %v1268 = vshrl.u32 %v768, 16
        %v1270 = vrot.slane %v1268, 4
        %v1271 = vshll.u32 %v768, 16
        %v1273 = vrot.slane %v1271, 5
        %v1274 = vor.u32 %v1270, %v1273
        %v1275 = vsel %vm1207, %v1266, %v1274
        %v1277 = vshrl.u32 %v759, 16
        %v1279 = vrot.slane %v1277, 4
        %v1280 = vshll.u32 %v759, 16
        %v1282 = vrot.slane %v1280, 5
        %v1283 = vor.u32 %v1279, %v1282
        %v1285 = vshrl.u32 %v769, 16
        %v1287 = vrot.slane %v1285, 4
        %v1288 = vshll.u32 %v769, 16
        %v1290 = vrot.slane %v1288, 5
        %v1291 = vor.u32 %v1287, %v1290
        %v1292 = vsel %vm1207, %v1283, %v1291
        %v1294 = vshrl.u32 %v760, 16
        %v1296 = vrot.slane %v1294, 4
        %v1297 = vshll.u32 %v760, 16
        %v1299 = vrot.slane %v1297, 5
        %v1300 = vor.u32 %v1296, %v1299
        %v1302 = vshrl.u32 %v770, 16
        %v1304 = vrot.slane %v1302, 4
        %v1305 = vshll.u32 %v770, 16
        %v1307 = vrot.slane %v1305, 5
        %v1308 = vor.u32 %v1304, %v1307
        %v1309 = vsel %vm1207, %v1300, %v1308
        %v1311 = vshrl.u32 %v761, 16
        %v1313 = vrot.slane %v1311, 4
        %v1314 = vshll.u32 %v761, 16
        %v1316 = vrot.slane %v1314, 5
        %v1317 = vor.u32 %v1313, %v1316
        %v1319 = vshrl.u32 %v771, 16
        %v1321 = vrot.slane %v1319, 4
        %v1322 = vshll.u32 %v771, 16
        %v1324 = vrot.slane %v1322, 5
        %v1325 = vor.u32 %v1321, %v1324
        %v1326 = vsel %vm1207, %v1317, %v1325
        %v1328 = vshrl.u32 %v762, 16
        %v1330 = vrot.slane %v1328, 4
        %v1331 = vshll.u32 %v762, 16
        %v1333 = vrot.slane %v1331, 5
        %v1334 = vor.u32 %v1330, %v1333
        %v1336 = vshrl.u32 %v772, 16
        %v1338 = vrot.slane %v1336, 4
        %v1339 = vshll.u32 %v772, 16
        %v1341 = vrot.slane %v1339, 5
        %v1342 = vor.u32 %v1338, %v1341
        %v1343 = vsel %vm1207, %v1334, %v1342
        %s1344 = scalar_lea.vmem %s3, 8
        %v1345 = vld [vmem:[%s1344] sm:$0xf]
        %v1347 = vsel %vm957, %v1224, 0
        %v1350 = vsel %vm957, %v1241, 0
        %v1353 = vsel %vm957, %v1258, 0
        %v1356 = vsel %vm957, %v1275, 0
        %v1359 = vsel %vm957, %v1292, 0
        %v1362 = vsel %vm957, %v1309, 0
        %v1365 = vsel %vm957, %v1326, 0
        %v1368 = vsel %vm957, %v1343, 0
        %v1371 = vsel %vm982, %v1345, 0
        %1373 = vmatprep.subr.bf16.mxu0 0
        %1374 = vmatpush1.bf16.msra.mxu0 %v1371
        %1375 = vmatprep.subr.bf16.mxu0 0
        %1376 = vmatpush1.bf16.msra.mxu0 0
        %1377 = vmatprep.subr.bf16.mxu0 0
        %1378 = vmatpush1.bf16.msra.mxu0 0
        %1379 = vmatprep.subr.bf16.mxu0 0
        %1380 = vmatpush1.bf16.msra.mxu0 0
        %1381 = vmatprep.subr.bf16.mxu0 0
        %1382 = vmatpush1.bf16.msra.mxu0 0
        %1383 = vmatprep.subr.bf16.mxu0 0
        %1384 = vmatpush1.bf16.msra.mxu0 0
        %1385 = vmatprep.subr.bf16.mxu0 0
        %1386 = vmatpush1.bf16.msra.mxu0 0
        %1387 = vmatprep.subr.bf16.mxu0 0
        %1388 = vmatpush1.bf16.msra.mxu0 0
        %1389 = vmatprep.subr.bf16.mxu0 0
        %1390 = vmatpush1.bf16.msra.mxu0 0
        %1391 = vmatprep.subr.bf16.mxu0 0
        %1392 = vmatpush1.bf16.msra.mxu0 0
        %1393 = vmatprep.subr.bf16.mxu0 0
        %1394 = vmatpush1.bf16.msra.mxu0 0
        %1395 = vmatprep.subr.bf16.mxu0 0
        %1396 = vmatpush1.bf16.msra.mxu0 0
        %1397 = vmatprep.subr.bf16.mxu0 0
        %1398 = vmatpush1.bf16.msra.mxu0 0
        %1399 = vmatprep.subr.bf16.mxu0 0
        %1400 = vmatpush1.bf16.msra.mxu0 0
        %1401 = vmatprep.subr.bf16.mxu0 0
        %1402 = vmatpush1.bf16.msra.mxu0 0
        %1403 = vmatprep.subr.bf16.mxu0 0
        %1404 = vmatpush1.bf16.msra.mxu0 0
        %1405 = vmatprep.mubr.bf16.mxu0 0
        %1406 = vmatmul.mubr.bf16.gmra.mrb[0].mxu0 %v1347
        %v1407 = vpop.f32.mrb[0].mxu0
        %v1408 = vadd.f32 0.0, %v1407
        %v1409 = vpop.f32.mrb[0].mxu0
        %v1410 = vpop.f32.mrb[0].mxu0
        %v1411 = vadd.f32 0.0, %v1410
        %v1412 = vpop.f32.mrb[0].mxu0
        %1413 = vmatprep.mubr.bf16.mxu0 0
        %1414 = vmatmul.mubr.bf16.gmra.mrb[0].mxu0 %v1350
        %v1415 = vpop.f32.mrb[0].mxu0
        %v1416 = vadd.f32 0.0, %v1415
        %v1417 = vpop.f32.mrb[0].mxu0
        %v1418 = vpop.f32.mrb[0].mxu0
        %v1419 = vadd.f32 0.0, %v1418
        %v1420 = vpop.f32.mrb[0].mxu0
        %1421 = vmatprep.mubr.bf16.mxu0 0
        %1422 = vmatmul.mubr.bf16.gmra.mrb[0].mxu0 %v1353
        %v1423 = vpop.f32.mrb[0].mxu0
        %v1424 = vadd.f32 0.0, %v1423
        %v1425 = vpop.f32.mrb[0].mxu0
        %v1426 = vpop.f32.mrb[0].mxu0
        %v1427 = vadd.f32 0.0, %v1426
        %v1428 = vpop.f32.mrb[0].mxu0
        %1429 = vmatprep.mubr.bf16.mxu0 0
        %1430 = vmatmul.mubr.bf16.gmra.mrb[0].mxu0 %v1356
        %v1431 = vpop.f32.mrb[0].mxu0
        %v1432 = vadd.f32 0.0, %v1431
        %v1433 = vpop.f32.mrb[0].mxu0
        %v1434 = vpop.f32.mrb[0].mxu0
        %v1435 = vadd.f32 0.0, %v1434
        %v1436 = vpop.f32.mrb[0].mxu0
        %1437 = vmatprep.mubr.bf16.mxu0 0
        %1438 = vmatmul.mubr.bf16.gmra.mrb[0].mxu0 %v1359
        %v1439 = vpop.f32.mrb[0].mxu0
        %v1440 = vadd.f32 0.0, %v1439
        %v1441 = vpop.f32.mrb[0].mxu0
        %v1442 = vpop.f32.mrb[0].mxu0
        %v1443 = vadd.f32 0.0, %v1442
        %v1444 = vpop.f32.mrb[0].mxu0
        %1445 = vmatprep.mubr.bf16.mxu0 0
        %1446 = vmatmul.mubr.bf16.gmra.mrb[0].mxu0 %v1362
        %v1447 = vpop.f32.mrb[0].mxu0
        %v1448 = vadd.f32 0.0, %v1447
        %v1449 = vpop.f32.mrb[0].mxu0
        %v1450 = vpop.f32.mrb[0].mxu0
        %v1451 = vadd.f32 0.0, %v1450
        %v1452 = vpop.f32.mrb[0].mxu0
        %1453 = vmatprep.mubr.bf16.mxu0 0
        %1454 = vmatmul.mubr.bf16.gmra.mrb[0].mxu0 %v1365
        %v1455 = vpop.f32.mrb[0].mxu0
        %v1456 = vadd.f32 0.0, %v1455
        %v1457 = vpop.f32.mrb[0].mxu0
        %v1458 = vpop.f32.mrb[0].mxu0
        %v1459 = vadd.f32 0.0, %v1458
        %v1460 = vpop.f32.mrb[0].mxu0
        %1461 = vmatprep.mubr.bf16.mxu0 0
        %1462 = vmatmul.mubr.bf16.gmra.mrb[0].mxu0 %v1368
        %v1463 = vpop.f32.mrb[0].mxu0
        %v1464 = vadd.f32 0.0, %v1463
        %v1465 = vpop.f32.mrb[0].mxu0
        %v1466 = vpop.f32.mrb[0].mxu0
        %v1467 = vadd.f32 0.0, %v1466
        %v1468 = vpop.f32.mrb[0].mxu0
        %1469 = vdwg.mxu0
        %v1470 = vadd.f32 %v1145, %v1408
        %v1471 = vadd.f32 %v1148, %v1411
        %v1472 = vadd.f32 %v1153, %v1416
        %v1473 = vadd.f32 %v1156, %v1419
        %v1474 = vadd.f32 %v1161, %v1424
        %v1475 = vadd.f32 %v1164, %v1427
        %v1476 = vadd.f32 %v1169, %v1432
        %v1477 = vadd.f32 %v1172, %v1435
        %v1478 = vadd.f32 %v1177, %v1440
        %v1479 = vadd.f32 %v1180, %v1443
        %v1480 = vadd.f32 %v1185, %v1448
        %v1481 = vadd.f32 %v1188, %v1451
        %v1482 = vadd.f32 %v1193, %v1456
        %v1483 = vadd.f32 %v1196, %v1459
        %v1484 = vadd.f32 %v1201, %v1464
        %v1485 = vadd.f32 %v1204, %v1467
        %v1487 = vshrl.u32 %v751, 16
        %v1489 = vrot.slane %v1487, 3
        %v1490 = vshll.u32 %v751, 16
        %v1492 = vrot.slane %v1490, 4
        %v1493 = vor.u32 %v1489, %v1492
        %v1495 = vshrl.u32 %v752, 16
        %v1497 = vrot.slane %v1495, 3
        %v1498 = vshll.u32 %v752, 16
        %v1500 = vrot.slane %v1498, 4
        %v1501 = vor.u32 %v1497, %v1500
        %v1502 = vsel %vm776, %v1493, %v1501
        %s1503 = scalar_lea.vmem %s3, 12
        %v1504 = vld [vmem:[%s1503] sm:$0xf]
        %v1506 = vsel %vm957, %v1502, 0
        %v1509 = vsel %vm982, %v1504, 0
        %1511 = vmatprep.subr.bf16.mxu0 0
        %1512 = vmatpush1.bf16.msra.mxu0 %v1509
        %1513 = vmatprep.subr.bf16.mxu0 0
        %1514 = vmatpush1.bf16.msra.mxu0 0
        %1515 = vmatprep.subr.bf16.mxu0 0
        %1516 = vmatpush1.bf16.msra.mxu0 0
        %1517 = vmatprep.subr.bf16.mxu0 0
        %1518 = vmatpush1.bf16.msra.mxu0 0
        %1519 = vmatprep.subr.bf16.mxu0 0
        %1520 = vmatpush1.bf16.msra.mxu0 0
        %1521 = vmatprep.subr.bf16.mxu0 0
        %1522 = vmatpush1.bf16.msra.mxu0 0
        %1523 = vmatprep.subr.bf16.mxu0 0
        %1524 = vmatpush1.bf16.msra.mxu0 0
        %1525 = vmatprep.subr.bf16.mxu0 0
        %1526 = vmatpush1.bf16.msra.mxu0 0
        %1527 = vmatprep.subr.bf16.mxu0 0
        %1528 = vmatpush1.bf16.msra.mxu0 0
        %1529 = vmatprep.subr.bf16.mxu0 0
        %1530 = vmatpush1.bf16.msra.mxu0 0
        %1531 = vmatprep.subr.bf16.mxu0 0
        %1532 = vmatpush1.bf16.msra.mxu0 0
        %1533 = vmatprep.subr.bf16.mxu0 0
        %1534 = vmatpush1.bf16.msra.mxu0 0
        %1535 = vmatprep.subr.bf16.mxu0 0
        %1536 = vmatpush1.bf16.msra.mxu0 0
        %1537 = vmatprep.subr.bf16.mxu0 0
        %1538 = vmatpush1.bf16.msra.mxu0 0
        %1539 = vmatprep.subr.bf16.mxu0 0
        %1540 = vmatpush1.bf16.msra.mxu0 0
        %1541 = vmatprep.subr.bf16.mxu0 0
        %1542 = vmatpush1.bf16.msra.mxu0 0
        %1543 = vmatprep.mubr.bf16.mxu0 0
        %1544 = vmatmul.mubr.bf16.gmra.mrb[0].mxu0 %v1087
        %v1545 = vpop.f32.mrb[0].mxu0
        %v1546 = vadd.f32 0.0, %v1545
        %v1547 = vpop.f32.mrb[0].mxu0
        %v1548 = vpop.f32.mrb[0].mxu0
        %v1549 = vadd.f32 0.0, %v1548
        %v1550 = vpop.f32.mrb[0].mxu0
        %1551 = vmatprep.mubr.bf16.mxu0 0
        %1552 = vmatmul.mubr.bf16.gmra.mrb[0].mxu0 %v1090
        %v1553 = vpop.f32.mrb[0].mxu0
        %v1554 = vadd.f32 0.0, %v1553
        %v1555 = vpop.f32.mrb[0].mxu0
        %v1556 = vpop.f32.mrb[0].mxu0
        %v1557 = vadd.f32 0.0, %v1556
        %v1558 = vpop.f32.mrb[0].mxu0
        %1559 = vmatprep.mubr.bf16.mxu0 0
        %1560 = vmatmul.mubr.bf16.gmra.mrb[0].mxu0 %v1093
        %v1561 = vpop.f32.mrb[0].mxu0
        %v1562 = vadd.f32 0.0, %v1561
        %v1563 = vpop.f32.mrb[0].mxu0
        %v1564 = vpop.f32.mrb[0].mxu0
        %v1565 = vadd.f32 0.0, %v1564
        %v1566 = vpop.f32.mrb[0].mxu0
        %1567 = vmatprep.mubr.bf16.mxu0 0
        %1568 = vmatmul.mubr.bf16.gmra.mrb[0].mxu0 %v1096
        %v1569 = vpop.f32.mrb[0].mxu0
        %v1570 = vadd.f32 0.0, %v1569
        %v1571 = vpop.f32.mrb[0].mxu0
        %v1572 = vpop.f32.mrb[0].mxu0
        %v1573 = vadd.f32 0.0, %v1572
        %v1574 = vpop.f32.mrb[0].mxu0
        %1575 = vmatprep.mubr.bf16.mxu0 0
        %1576 = vmatmul.mubr.bf16.gmra.mrb[0].mxu0 %v1099
        %v1577 = vpop.f32.mrb[0].mxu0
        %v1578 = vadd.f32 0.0, %v1577
        %v1579 = vpop.f32.mrb[0].mxu0
        %v1580 = vpop.f32.mrb[0].mxu0
        %v1581 = vadd.f32 0.0, %v1580
        %v1582 = vpop.f32.mrb[0].mxu0
        %1583 = vmatprep.mubr.bf16.mxu0 0
        %1584 = vmatmul.mubr.bf16.gmra.mrb[0].mxu0 %v1102
        %v1585 = vpop.f32.mrb[0].mxu0
        %v1586 = vadd.f32 0.0, %v1585
        %v1587 = vpop.f32.mrb[0].mxu0
        %v1588 = vpop.f32.mrb[0].mxu0
        %v1589 = vadd.f32 0.0, %v1588
        %v1590 = vpop.f32.mrb[0].mxu0
        %1591 = vmatprep.mubr.bf16.mxu0 0
        %1592 = vmatmul.mubr.bf16.gmra.mrb[0].mxu0 %v1105
        %v1593 = vpop.f32.mrb[0].mxu0
        %v1594 = vadd.f32 0.0, %v1593
        %v1595 = vpop.f32.mrb[0].mxu0
        %v1596 = vpop.f32.mrb[0].mxu0
        %v1597 = vadd.f32 0.0, %v1596
        %v1598 = vpop.f32.mrb[0].mxu0
        %1599 = vmatprep.mubr.bf16.mxu0 0
        %1600 = vmatmul.mubr.bf16.gmra.mrb[0].mxu0 %v1506
        %v1601 = vpop.f32.mrb[0].mxu0
        %v1602 = vadd.f32 0.0, %v1601
        %v1603 = vpop.f32.mrb[0].mxu0
        %v1604 = vpop.f32.mrb[0].mxu0
        %v1605 = vadd.f32 0.0, %v1604
        %v1606 = vpop.f32.mrb[0].mxu0
        %1607 = vdwg.mxu0
        %v1608 = vadd.f32 %v1470, %v1546
        %v1609 = vadd.f32 %v1471, %v1549
        %v1610 = vadd.f32 %v1472, %v1554
        %v1611 = vadd.f32 %v1473, %v1557
        %v1612 = vadd.f32 %v1474, %v1562
        %v1613 = vadd.f32 %v1475, %v1565
        %v1614 = vadd.f32 %v1476, %v1570
        %v1615 = vadd.f32 %v1477, %v1573
        %v1616 = vadd.f32 %v1478, %v1578
        %v1617 = vadd.f32 %v1479, %v1581
        %v1618 = vadd.f32 %v1480, %v1586
        %v1619 = vadd.f32 %v1481, %v1589
        %v1620 = vadd.f32 %v1482, %v1594
        %v1621 = vadd.f32 %v1483, %v1597
        %v1622 = vadd.f32 %v1484, %v1602
        %v1623 = vadd.f32 %v1485, %v1605
        %v1626 = vrot.slane %v763, 4
        %v1627 = vrot.slane %v752, 4
        %v1628 = vsel %vm930, %v1626, %v1627
        %s1629 = scalar_lea.vmem %s3, 16
        %v1630 = vld [vmem:[%s1629] sm:$0xf]
        %v1632 = vsel %vm957, %v1628, 0
        %v1635 = vsel %vm982, %v1630, 0
        %1637 = vmatprep.subr.bf16.mxu0 0
        %1638 = vmatpush1.bf16.msra.mxu0 %v1635
        %1639 = vmatprep.subr.bf16.mxu0 0
        %1640 = vmatpush1.bf16.msra.mxu0 0
        %1641 = vmatprep.subr.bf16.mxu0 0
        %1642 = vmatpush1.bf16.msra.mxu0 0
        %1643 = vmatprep.subr.bf16.mxu0 0
        %1644 = vmatpush1.bf16.msra.mxu0 0
        %1645 = vmatprep.subr.bf16.mxu0 0
        %1646 = vmatpush1.bf16.msra.mxu0 0
        %1647 = vmatprep.subr.bf16.mxu0 0
        %1648 = vmatpush1.bf16.msra.mxu0 0
        %1649 = vmatprep.subr.bf16.mxu0 0
        %1650 = vmatpush1.bf16.msra.mxu0 0
        %1651 = vmatprep.subr.bf16.mxu0 0
        %1652 = vmatpush1.bf16.msra.mxu0 0
        %1653 = vmatprep.subr.bf16.mxu0 0
        %1654 = vmatpush1.bf16.msra.mxu0 0
        %1655 = vmatprep.subr.bf16.mxu0 0
        %1656 = vmatpush1.bf16.msra.mxu0 0
        %1657 = vmatprep.subr.bf16.mxu0 0
        %1658 = vmatpush1.bf16.msra.mxu0 0
        %1659 = vmatprep.subr.bf16.mxu0 0
        %1660 = vmatpush1.bf16.msra.mxu0 0
        %1661 = vmatprep.subr.bf16.mxu0 0
        %1662 = vmatpush1.bf16.msra.mxu0 0
        %1663 = vmatprep.subr.bf16.mxu0 0
        %1664 = vmatpush1.bf16.msra.mxu0 0
        %1665 = vmatprep.subr.bf16.mxu0 0
        %1666 = vmatpush1.bf16.msra.mxu0 0
        %1667 = vmatprep.subr.bf16.mxu0 0
        %1668 = vmatpush1.bf16.msra.mxu0 0
        %1669 = vmatprep.mubr.bf16.mxu0 0
        %1670 = vmatmul.mubr.bf16.gmra.mrb[0].mxu0 %v962
        %v1671 = vpop.f32.mrb[0].mxu0
        %v1672 = vadd.f32 0.0, %v1671
        %v1673 = vpop.f32.mrb[0].mxu0
        %v1674 = vpop.f32.mrb[0].mxu0
        %v1675 = vadd.f32 0.0, %v1674
        %v1676 = vpop.f32.mrb[0].mxu0
        %1677 = vmatprep.mubr.bf16.mxu0 0
        %1678 = vmatmul.mubr.bf16.gmra.mrb[0].mxu0 %v965
        %v1679 = vpop.f32.mrb[0].mxu0
        %v1680 = vadd.f32 0.0, %v1679
        %v1681 = vpop.f32.mrb[0].mxu0
        %v1682 = vpop.f32.mrb[0].mxu0
        %v1683 = vadd.f32 0.0, %v1682
        %v1684 = vpop.f32.mrb[0].mxu0
        %1685 = vmatprep.mubr.bf16.mxu0 0
        %1686 = vmatmul.mubr.bf16.gmra.mrb[0].mxu0 %v968
        %v1687 = vpop.f32.mrb[0].mxu0
        %v1688 = vadd.f32 0.0, %v1687
        %v1689 = vpop.f32.mrb[0].mxu0
        %v1690 = vpop.f32.mrb[0].mxu0
        %v1691 = vadd.f32 0.0, %v1690
        %v1692 = vpop.f32.mrb[0].mxu0
        %1693 = vmatprep.mubr.bf16.mxu0 0
        %1694 = vmatmul.mubr.bf16.gmra.mrb[0].mxu0 %v971
        %v1695 = vpop.f32.mrb[0].mxu0
        %v1696 = vadd.f32 0.0, %v1695
        %v1697 = vpop.f32.mrb[0].mxu0
        %v1698 = vpop.f32.mrb[0].mxu0
        %v1699 = vadd.f32 0.0, %v1698
        %v1700 = vpop.f32.mrb[0].mxu0
        %1701 = vmatprep.mubr.bf16.mxu0 0
        %1702 = vmatmul.mubr.bf16.gmra.mrb[0].mxu0 %v974
        %v1703 = vpop.f32.mrb[0].mxu0
        %v1704 = vadd.f32 0.0, %v1703
        %v1705 = vpop.f32.mrb[0].mxu0
        %v1706 = vpop.f32.mrb[0].mxu0
        %v1707 = vadd.f32 0.0, %v1706
        %v1708 = vpop.f32.mrb[0].mxu0
        %1709 = vmatprep.mubr.bf16.mxu0 0
        %1710 = vmatmul.mubr.bf16.gmra.mrb[0].mxu0 %v977
        %v1711 = vpop.f32.mrb[0].mxu0
        %v1712 = vadd.f32 0.0, %v1711
        %v1713 = vpop.f32.mrb[0].mxu0
        %v1714 = vpop.f32.mrb[0].mxu0
        %v1715 = vadd.f32 0.0, %v1714
        %v1716 = vpop.f32.mrb[0].mxu0
        %1717 = vmatprep.mubr.bf16.mxu0 0
        %1718 = vmatmul.mubr.bf16.gmra.mrb[0].mxu0 %v980
        %v1719 = vpop.f32.mrb[0].mxu0
        %v1720 = vadd.f32 0.0, %v1719
        %v1721 = vpop.f32.mrb[0].mxu0
        %v1722 = vpop.f32.mrb[0].mxu0
        %v1723 = vadd.f32 0.0, %v1722
        %v1724 = vpop.f32.mrb[0].mxu0
        %1725 = vmatprep.mubr.bf16.mxu0 0
        %1726 = vmatmul.mubr.bf16.gmra.mrb[0].mxu0 %v1632
        %v1727 = vpop.f32.mrb[0].mxu0
        %v1728 = vadd.f32 0.0, %v1727
        %v1729 = vpop.f32.mrb[0].mxu0
        %v1730 = vpop.f32.mrb[0].mxu0
        %v1731 = vadd.f32 0.0, %v1730
        %v1732 = vpop.f32.mrb[0].mxu0
        %1733 = vdwg.mxu0
        %v1734 = vadd.f32 %v1608, %v1672
        %v1735 = vadd.f32 %v1609, %v1675
        %v1736 = vadd.f32 %v1610, %v1680
        %v1737 = vadd.f32 %v1611, %v1683
        %v1738 = vadd.f32 %v1612, %v1688
        %v1739 = vadd.f32 %v1613, %v1691
        %v1740 = vadd.f32 %v1614, %v1696
        %v1741 = vadd.f32 %v1615, %v1699
        %v1742 = vadd.f32 %v1616, %v1704
        %v1743 = vadd.f32 %v1617, %v1707
        %v1744 = vadd.f32 %v1618, %v1712
        %v1745 = vadd.f32 %v1619, %v1715
        %v1746 = vadd.f32 %v1620, %v1720
        %v1747 = vadd.f32 %v1621, %v1723
        %v1748 = vadd.f32 %v1622, %v1728
        %v1749 = vadd.f32 %v1623, %v1731
        %v1751 = vshrl.u32 %v763, 16
        %v1753 = vrot.slane %v1751, 4
        %v1754 = vshll.u32 %v763, 16
        %v1756 = vrot.slane %v1754, 5
        %v1757 = vor.u32 %v1753, %v1756
        %v1759 = vshrl.u32 %v773, 16
        %v1761 = vrot.slane %v1759, 4
        %v1762 = vshll.u32 %v773, 16
        %v1764 = vrot.slane %v1762, 5
        %v1765 = vor.u32 %v1761, %v1764
        %v1766 = vsel %vm1207, %v1757, %v1765
        %s1767 = scalar_lea.vmem %s3, 20
        %v1768 = vld [vmem:[%s1767] sm:$0xf]
        %v1770 = vsel %vm957, %v1766, 0
        %v1773 = vsel %vm982, %v1768, 0
        %1775 = vmatprep.subr.bf16.mxu0 0
        %1776 = vmatpush1.bf16.msra.mxu0 %v1773
        %1777 = vmatprep.subr.bf16.mxu0 0
        %1778 = vmatpush1.bf16.msra.mxu0 0
        %1779 = vmatprep.subr.bf16.mxu0 0
        %1780 = vmatpush1.bf16.msra.mxu0 0
        %1781 = vmatprep.subr.bf16.mxu0 0
        %1782 = vmatpush1.bf16.msra.mxu0 0
        %1783 = vmatprep.subr.bf16.mxu0 0
        %1784 = vmatpush1.bf16.msra.mxu0 0
        %1785 = vmatprep.subr.bf16.mxu0 0
        %1786 = vmatpush1.bf16.msra.mxu0 0
        %1787 = vmatprep.subr.bf16.mxu0 0
        %1788 = vmatpush1.bf16.msra.mxu0 0
        %1789 = vmatprep.subr.bf16.mxu0 0
        %1790 = vmatpush1.bf16.msra.mxu0 0
        %1791 = vmatprep.subr.bf16.mxu0 0
        %1792 = vmatpush1.bf16.msra.mxu0 0
        %1793 = vmatprep.subr.bf16.mxu0 0
        %1794 = vmatpush1.bf16.msra.mxu0 0
        %1795 = vmatprep.subr.bf16.mxu0 0
        %1796 = vmatpush1.bf16.msra.mxu0 0
        %1797 = vmatprep.subr.bf16.mxu0 0
        %1798 = vmatpush1.bf16.msra.mxu0 0
        %1799 = vmatprep.subr.bf16.mxu0 0
        %1800 = vmatpush1.bf16.msra.mxu0 0
        %1801 = vmatprep.subr.bf16.mxu0 0
        %1802 = vmatpush1.bf16.msra.mxu0 0
        %1803 = vmatprep.subr.bf16.mxu0 0
        %1804 = vmatpush1.bf16.msra.mxu0 0
        %1805 = vmatprep.subr.bf16.mxu0 0
        %1806 = vmatpush1.bf16.msra.mxu0 0
        %1807 = vmatprep.mubr.bf16.mxu0 0
        %1808 = vmatmul.mubr.bf16.gmra.mrb[0].mxu0 %v1350
        %v1809 = vpop.f32.mrb[0].mxu0
        %v1810 = vadd.f32 0.0, %v1809
        %v1811 = vpop.f32.mrb[0].mxu0
        %v1812 = vpop.f32.mrb[0].mxu0
        %v1813 = vadd.f32 0.0, %v1812
        %v1814 = vpop.f32.mrb[0].mxu0
        %1815 = vmatprep.mubr.bf16.mxu0 0
        %1816 = vmatmul.mubr.bf16.gmra.mrb[0].mxu0 %v1353
        %v1817 = vpop.f32.mrb[0].mxu0
        %v1818 = vadd.f32 0.0, %v1817
        %v1819 = vpop.f32.mrb[0].mxu0
        %v1820 = vpop.f32.mrb[0].mxu0
        %v1821 = vadd.f32 0.0, %v1820
        %v1822 = vpop.f32.mrb[0].mxu0
        %1823 = vmatprep.mubr.bf16.mxu0 0
        %1824 = vmatmul.mubr.bf16.gmra.mrb[0].mxu0 %v1356
        %v1825 = vpop.f32.mrb[0].mxu0
        %v1826 = vadd.f32 0.0, %v1825
        %v1827 = vpop.f32.mrb[0].mxu0
        %v1828 = vpop.f32.mrb[0].mxu0
        %v1829 = vadd.f32 0.0, %v1828
        %v1830 = vpop.f32.mrb[0].mxu0
        %1831 = vmatprep.mubr.bf16.mxu0 0
        %1832 = vmatmul.mubr.bf16.gmra.mrb[0].mxu0 %v1359
        %v1833 = vpop.f32.mrb[0].mxu0
        %v1834 = vadd.f32 0.0, %v1833
        %v1835 = vpop.f32.mrb[0].mxu0
        %v1836 = vpop.f32.mrb[0].mxu0
        %v1837 = vadd.f32 0.0, %v1836
        %v1838 = vpop.f32.mrb[0].mxu0
        %1839 = vmatprep.mubr.bf16.mxu0 0
        %1840 = vmatmul.mubr.bf16.gmra.mrb[0].mxu0 %v1362
        %v1841 = vpop.f32.mrb[0].mxu0
        %v1842 = vadd.f32 0.0, %v1841
        %v1843 = vpop.f32.mrb[0].mxu0
        %v1844 = vpop.f32.mrb[0].mxu0
        %v1845 = vadd.f32 0.0, %v1844
        %v1846 = vpop.f32.mrb[0].mxu0
        %1847 = vmatprep.mubr.bf16.mxu0 0
        %1848 = vmatmul.mubr.bf16.gmra.mrb[0].mxu0 %v1365
        %v1849 = vpop.f32.mrb[0].mxu0
        %v1850 = vadd.f32 0.0, %v1849
        %v1851 = vpop.f32.mrb[0].mxu0
        %v1852 = vpop.f32.mrb[0].mxu0
        %v1853 = vadd.f32 0.0, %v1852
        %v1854 = vpop.f32.mrb[0].mxu0
        %1855 = vmatprep.mubr.bf16.mxu0 0
        %1856 = vmatmul.mubr.bf16.gmra.mrb[0].mxu0 %v1368
        %v1857 = vpop.f32.mrb[0].mxu0
        %v1858 = vadd.f32 0.0, %v1857
        %v1859 = vpop.f32.mrb[0].mxu0
        %v1860 = vpop.f32.mrb[0].mxu0
        %v1861 = vadd.f32 0.0, %v1860
        %v1862 = vpop.f32.mrb[0].mxu0
        %1863 = vmatprep.mubr.bf16.mxu0 0
        %1864 = vmatmul.mubr.bf16.gmra.mrb[0].mxu0 %v1770
        %v1865 = vpop.f32.mrb[0].mxu0
        %v1866 = vadd.f32 0.0, %v1865
        %v1867 = vpop.f32.mrb[0].mxu0
        %v1868 = vpop.f32.mrb[0].mxu0
        %v1869 = vadd.f32 0.0, %v1868
        %v1870 = vpop.f32.mrb[0].mxu0
        %1871 = vdwg.mxu0
        %v1872 = vadd.f32 %v1734, %v1810
        %v1873 = vadd.f32 %v1735, %v1813
        %v1874 = vadd.f32 %v1736, %v1818
        %v1875 = vadd.f32 %v1737, %v1821
        %v1876 = vadd.f32 %v1738, %v1826
        %v1877 = vadd.f32 %v1739, %v1829
        %v1878 = vadd.f32 %v1740, %v1834
        %v1879 = vadd.f32 %v1741, %v1837
        %v1880 = vadd.f32 %v1742, %v1842
        %v1881 = vadd.f32 %v1743, %v1845
        %v1882 = vadd.f32 %v1744, %v1850
        %v1883 = vadd.f32 %v1745, %v1853
        %v1884 = vadd.f32 %v1746, %v1858
        %v1885 = vadd.f32 %v1747, %v1861
        %v1886 = vadd.f32 %v1748, %v1866
        %v1887 = vadd.f32 %v1749, %v1869
        %v1889 = vshrl.u32 %v753, 16
        %v1891 = vrot.slane %v1889, 3
        %v1892 = vshll.u32 %v753, 16
        %v1894 = vrot.slane %v1892, 4
        %v1895 = vor.u32 %v1891, %v1894
        %v1897 = vshrl.u32 %v754, 16
        %v1899 = vrot.slane %v1897, 3
        %v1900 = vshll.u32 %v754, 16
        %v1902 = vrot.slane %v1900, 4
        %v1903 = vor.u32 %v1899, %v1902
        %v1904 = vsel %vm776, %v1895, %v1903
        %s1905 = scalar_lea.vmem %s3, 24
        %v1906 = vld [vmem:[%s1905] sm:$0xf]
        %v1908 = vsel %vm957, %v1904, 0
        %v1911 = vsel %vm982, %v1906, 0
        %1913 = vmatprep.subr.bf16.mxu0 0
        %1914 = vmatpush1.bf16.msra.mxu0 %v1911
        %1915 = vmatprep.subr.bf16.mxu0 0
        %1916 = vmatpush1.bf16.msra.mxu0 0
        %1917 = vmatprep.subr.bf16.mxu0 0
        %1918 = vmatpush1.bf16.msra.mxu0 0
        %1919 = vmatprep.subr.bf16.mxu0 0
        %1920 = vmatpush1.bf16.msra.mxu0 0
        %1921 = vmatprep.subr.bf16.mxu0 0
        %1922 = vmatpush1.bf16.msra.mxu0 0
        %1923 = vmatprep.subr.bf16.mxu0 0
        %1924 = vmatpush1.bf16.msra.mxu0 0
        %1925 = vmatprep.subr.bf16.mxu0 0
        %1926 = vmatpush1.bf16.msra.mxu0 0
        %1927 = vmatprep.subr.bf16.mxu0 0
        %1928 = vmatpush1.bf16.msra.mxu0 0
        %1929 = vmatprep.subr.bf16.mxu0 0
        %1930 = vmatpush1.bf16.msra.mxu0 0
        %1931 = vmatprep.subr.bf16.mxu0 0
        %1932 = vmatpush1.bf16.msra.mxu0 0
        %1933 = vmatprep.subr.bf16.mxu0 0
        %1934 = vmatpush1.bf16.msra.mxu0 0
        %1935 = vmatprep.subr.bf16.mxu0 0
        %1936 = vmatpush1.bf16.msra.mxu0 0
        %1937 = vmatprep.subr.bf16.mxu0 0
        %1938 = vmatpush1.bf16.msra.mxu0 0
        %1939 = vmatprep.subr.bf16.mxu0 0
        %1940 = vmatpush1.bf16.msra.mxu0 0
        %1941 = vmatprep.subr.bf16.mxu0 0
        %1942 = vmatpush1.bf16.msra.mxu0 0
        %1943 = vmatprep.subr.bf16.mxu0 0
        %1944 = vmatpush1.bf16.msra.mxu0 0
        %1945 = vmatprep.mubr.bf16.mxu0 0
        %1946 = vmatmul.mubr.bf16.gmra.mrb[0].mxu0 %v1090
        %v1947 = vpop.f32.mrb[0].mxu0
        %v1948 = vadd.f32 0.0, %v1947
        %v1949 = vpop.f32.mrb[0].mxu0
        %v1950 = vpop.f32.mrb[0].mxu0
        %v1951 = vadd.f32 0.0, %v1950
        %v1952 = vpop.f32.mrb[0].mxu0
        %1953 = vmatprep.mubr.bf16.mxu0 0
        %1954 = vmatmul.mubr.bf16.gmra.mrb[0].mxu0 %v1093
        %v1955 = vpop.f32.mrb[0].mxu0
        %v1956 = vadd.f32 0.0, %v1955
        %v1957 = vpop.f32.mrb[0].mxu0
        %v1958 = vpop.f32.mrb[0].mxu0
        %v1959 = vadd.f32 0.0, %v1958
        %v1960 = vpop.f32.mrb[0].mxu0
        %1961 = vmatprep.mubr.bf16.mxu0 0
        %1962 = vmatmul.mubr.bf16.gmra.mrb[0].mxu0 %v1096
        %v1963 = vpop.f32.mrb[0].mxu0
        %v1964 = vadd.f32 0.0, %v1963
        %v1965 = vpop.f32.mrb[0].mxu0
        %v1966 = vpop.f32.mrb[0].mxu0
        %v1967 = vadd.f32 0.0, %v1966
        %v1968 = vpop.f32.mrb[0].mxu0
        %1969 = vmatprep.mubr.bf16.mxu0 0
        %1970 = vmatmul.mubr.bf16.gmra.mrb[0].mxu0 %v1099
        %v1971 = vpop.f32.mrb[0].mxu0
        %v1972 = vadd.f32 0.0, %v1971
        %v1973 = vpop.f32.mrb[0].mxu0
        %v1974 = vpop.f32.mrb[0].mxu0
        %v1975 = vadd.f32 0.0, %v1974
        %v1976 = vpop.f32.mrb[0].mxu0
        %1977 = vmatprep.mubr.bf16.mxu0 0
        %1978 = vmatmul.mubr.bf16.gmra.mrb[0].mxu0 %v1102
        %v1979 = vpop.f32.mrb[0].mxu0
        %v1980 = vadd.f32 0.0, %v1979
        %v1981 = vpop.f32.mrb[0].mxu0
        %v1982 = vpop.f32.mrb[0].mxu0
        %v1983 = vadd.f32 0.0, %v1982
        %v1984 = vpop.f32.mrb[0].mxu0
        %1985 = vmatprep.mubr.bf16.mxu0 0
        %1986 = vmatmul.mubr.bf16.gmra.mrb[0].mxu0 %v1105
        %v1987 = vpop.f32.mrb[0].mxu0
        %v1988 = vadd.f32 0.0, %v1987
        %v1989 = vpop.f32.mrb[0].mxu0
        %v1990 = vpop.f32.mrb[0].mxu0
        %v1991 = vadd.f32 0.0, %v1990
        %v1992 = vpop.f32.mrb[0].mxu0
        %1993 = vmatprep.mubr.bf16.mxu0 0
        %1994 = vmatmul.mubr.bf16.gmra.mrb[0].mxu0 %v1506
        %v1995 = vpop.f32.mrb[0].mxu0
        %v1996 = vadd.f32 0.0, %v1995
        %v1997 = vpop.f32.mrb[0].mxu0
        %v1998 = vpop.f32.mrb[0].mxu0
        %v1999 = vadd.f32 0.0, %v1998
        %v2000 = vpop.f32.mrb[0].mxu0
        %2001 = vmatprep.mubr.bf16.mxu0 0
        %2002 = vmatmul.mubr.bf16.gmra.mrb[0].mxu0 %v1908
        %v2003 = vpop.f32.mrb[0].mxu0
        %v2004 = vadd.f32 0.0, %v2003
        %v2005 = vpop.f32.mrb[0].mxu0
        %v2006 = vpop.f32.mrb[0].mxu0
        %v2007 = vadd.f32 0.0, %v2006
        %v2008 = vpop.f32.mrb[0].mxu0
        %2009 = vdwg.mxu0
        %v2010 = vadd.f32 %v1872, %v1948
        %v2011 = vadd.f32 %v1873, %v1951
        %v2012 = vadd.f32 %v1874, %v1956
        %v2013 = vadd.f32 %v1875, %v1959
        %v2014 = vadd.f32 %v1876, %v1964
        %v2015 = vadd.f32 %v1877, %v1967
        %v2016 = vadd.f32 %v1878, %v1972
        %v2017 = vadd.f32 %v1879, %v1975
        %v2018 = vadd.f32 %v1880, %v1980
        %v2019 = vadd.f32 %v1881, %v1983
        %v2020 = vadd.f32 %v1882, %v1988
        %v2021 = vadd.f32 %v1883, %v1991
        %v2022 = vadd.f32 %v1884, %v1996
        %v2023 = vadd.f32 %v1885, %v1999
        %v2024 = vadd.f32 %v1886, %v2004
        %v2025 = vadd.f32 %v1887, %v2007
        %v2028 = vrot.slane %v764, 4
        %v2029 = vrot.slane %v754, 4
        %v2030 = vsel %vm930, %v2028, %v2029
        %s2031 = scalar_lea.vmem %s3, 28
        %v2032 = vld [vmem:[%s2031] sm:$0xf]
        %v2034 = vsel %vm957, %v2030, 0
        %v2037 = vsel %vm982, %v2032, 0
        %2039 = vmatprep.subr.bf16.mxu0 0
        %2040 = vmatpush1.bf16.msra.mxu0 %v2037
        %2041 = vmatprep.subr.bf16.mxu0 0
        %2042 = vmatpush1.bf16.msra.mxu0 0
        %2043 = vmatprep.subr.bf16.mxu0 0
        %2044 = vmatpush1.bf16.msra.mxu0 0
        %2045 = vmatprep.subr.bf16.mxu0 0
        %2046 = vmatpush1.bf16.msra.mxu0 0
        %2047 = vmatprep.subr.bf16.mxu0 0
        %2048 = vmatpush1.bf16.msra.mxu0 0
        %2049 = vmatprep.subr.bf16.mxu0 0
        %2050 = vmatpush1.bf16.msra.mxu0 0
        %2051 = vmatprep.subr.bf16.mxu0 0
        %2052 = vmatpush1.bf16.msra.mxu0 0
        %2053 = vmatprep.subr.bf16.mxu0 0
        %2054 = vmatpush1.bf16.msra.mxu0 0
        %2055 = vmatprep.subr.bf16.mxu0 0
        %2056 = vmatpush1.bf16.msra.mxu0 0
        %2057 = vmatprep.subr.bf16.mxu0 0
        %2058 = vmatpush1.bf16.msra.mxu0 0
        %2059 = vmatprep.subr.bf16.mxu0 0
        %2060 = vmatpush1.bf16.msra.mxu0 0
        %2061 = vmatprep.subr.bf16.mxu0 0
        %2062 = vmatpush1.bf16.msra.mxu0 0
        %2063 = vmatprep.subr.bf16.mxu0 0
        %2064 = vmatpush1.bf16.msra.mxu0 0
        %2065 = vmatprep.subr.bf16.mxu0 0
        %2066 = vmatpush1.bf16.msra.mxu0 0
        %2067 = vmatprep.subr.bf16.mxu0 0
        %2068 = vmatpush1.bf16.msra.mxu0 0
        %2069 = vmatprep.subr.bf16.mxu0 0
        %2070 = vmatpush1.bf16.msra.mxu0 0
        %2071 = vmatprep.mubr.bf16.mxu0 0
        %2072 = vmatmul.mubr.bf16.gmra.mrb[0].mxu0 %v965
        %v2073 = vpop.f32.mrb[0].mxu0
        %v2074 = vadd.f32 0.0, %v2073
        %v2075 = vpop.f32.mrb[0].mxu0
        %v2076 = vpop.f32.mrb[0].mxu0
        %v2077 = vadd.f32 0.0, %v2076
        %v2078 = vpop.f32.mrb[0].mxu0
        %2079 = vmatprep.mubr.bf16.mxu0 0
        %2080 = vmatmul.mubr.bf16.gmra.mrb[0].mxu0 %v968
        %v2081 = vpop.f32.mrb[0].mxu0
        %v2082 = vadd.f32 0.0, %v2081
        %v2083 = vpop.f32.mrb[0].mxu0
        %v2084 = vpop.f32.mrb[0].mxu0
        %v2085 = vadd.f32 0.0, %v2084
        %v2086 = vpop.f32.mrb[0].mxu0
        %2087 = vmatprep.mubr.bf16.mxu0 0
        %2088 = vmatmul.mubr.bf16.gmra.mrb[0].mxu0 %v971
        %v2089 = vpop.f32.mrb[0].mxu0
        %v2090 = vadd.f32 0.0, %v2089
        %v2091 = vpop.f32.mrb[0].mxu0
        %v2092 = vpop.f32.mrb[0].mxu0
        %v2093 = vadd.f32 0.0, %v2092
        %v2094 = vpop.f32.mrb[0].mxu0
        %2095 = vmatprep.mubr.bf16.mxu0 0
        %2096 = vmatmul.mubr.bf16.gmra.mrb[0].mxu0 %v974
        %v2097 = vpop.f32.mrb[0].mxu0
        %v2098 = vadd.f32 0.0, %v2097
        %v2099 = vpop.f32.mrb[0].mxu0
        %v2100 = vpop.f32.mrb[0].mxu0
        %v2101 = vadd.f32 0.0, %v2100
        %v2102 = vpop.f32.mrb[0].mxu0
        %2103 = vmatprep.mubr.bf16.mxu0 0
        %2104 = vmatmul.mubr.bf16.gmra.mrb[0].mxu0 %v977
        %v2105 = vpop.f32.mrb[0].mxu0
        %v2106 = vadd.f32 0.0, %v2105
        %v2107 = vpop.f32.mrb[0].mxu0
        %v2108 = vpop.f32.mrb[0].mxu0
        %v2109 = vadd.f32 0.0, %v2108
        %v2110 = vpop.f32.mrb[0].mxu0
        %2111 = vmatprep.mubr.bf16.mxu0 0
        %2112 = vmatmul.mubr.bf16.gmra.mrb[0].mxu0 %v980
        %v2113 = vpop.f32.mrb[0].mxu0
        %v2114 = vadd.f32 0.0, %v2113
        %v2115 = vpop.f32.mrb[0].mxu0
        %v2116 = vpop.f32.mrb[0].mxu0
        %v2117 = vadd.f32 0.0, %v2116
        %v2118 = vpop.f32.mrb[0].mxu0
        %2119 = vmatprep.mubr.bf16.mxu0 0
        %2120 = vmatmul.mubr.bf16.gmra.mrb[0].mxu0 %v1632
        %v2121 = vpop.f32.mrb[0].mxu0
        %v2122 = vadd.f32 0.0, %v2121
        %v2123 = vpop.f32.mrb[0].mxu0
        %v2124 = vpop.f32.mrb[0].mxu0
        %v2125 = vadd.f32 0.0, %v2124
        %v2126 = vpop.f32.mrb[0].mxu0
        %2127 = vmatprep.mubr.bf16.mxu0 0
        %2128 = vmatmul.mubr.bf16.gmra.mrb[0].mxu0 %v2034
        %v2129 = vpop.f32.mrb[0].mxu0
        %v2130 = vadd.f32 0.0, %v2129
        %v2131 = vpop.f32.mrb[0].mxu0
        %v2132 = vpop.f32.mrb[0].mxu0
        %v2133 = vadd.f32 0.0, %v2132
        %v2134 = vpop.f32.mrb[0].mxu0
        %2135 = vdwg.mxu0
        %v2136 = vadd.f32 %v2010, %v2074
        %v2137 = vadd.f32 %v2011, %v2077
        %v2138 = vadd.f32 %v2012, %v2082
        %v2139 = vadd.f32 %v2013, %v2085
        %v2140 = vadd.f32 %v2014, %v2090
        %v2141 = vadd.f32 %v2015, %v2093
        %v2142 = vadd.f32 %v2016, %v2098
        %v2143 = vadd.f32 %v2017, %v2101
        %v2144 = vadd.f32 %v2018, %v2106
        %v2145 = vadd.f32 %v2019, %v2109
        %v2146 = vadd.f32 %v2020, %v2114
        %v2147 = vadd.f32 %v2021, %v2117
        %v2148 = vadd.f32 %v2022, %v2122
        %v2149 = vadd.f32 %v2023, %v2125
        %v2150 = vadd.f32 %v2024, %v2130
        %v2151 = vadd.f32 %v2025, %v2133
        %v2153 = vshrl.u32 %v764, 16
        %v2155 = vrot.slane %v2153, 4
        %v2156 = vshll.u32 %v764, 16
        %v2158 = vrot.slane %v2156, 5
        %v2159 = vor.u32 %v2155, %v2158
        %v2161 = vshrl.u32 %v774, 16
        %v2163 = vrot.slane %v2161, 4
        %v2164 = vshll.u32 %v774, 16
        %v2166 = vrot.slane %v2164, 5
        %v2167 = vor.u32 %v2163, %v2166
        %v2168 = vsel %vm1207, %v2159, %v2167
        %s2169 = scalar_lea.vmem %s3, 32
        %v2170 = vld [vmem:[%s2169] sm:$0xf]
        %v2172 = vsel %vm957, %v2168, 0
        %v2175 = vsel %vm982, %v2170, 0
        %2177 = vmatprep.subr.bf16.mxu0 0
        %2178 = vmatpush1.bf16.msra.mxu0 %v2175
        %2179 = vmatprep.subr.bf16.mxu0 0
        %2180 = vmatpush1.bf16.msra.mxu0 0
        %2181 = vmatprep.subr.bf16.mxu0 0
        %2182 = vmatpush1.bf16.msra.mxu0 0
        %2183 = vmatprep.subr.bf16.mxu0 0
        %2184 = vmatpush1.bf16.msra.mxu0 0
        %2185 = vmatprep.subr.bf16.mxu0 0
        %2186 = vmatpush1.bf16.msra.mxu0 0
        %2187 = vmatprep.subr.bf16.mxu0 0
        %2188 = vmatpush1.bf16.msra.mxu0 0
        %2189 = vmatprep.subr.bf16.mxu0 0
        %2190 = vmatpush1.bf16.msra.mxu0 0
        %2191 = vmatprep.subr.bf16.mxu0 0
        %2192 = vmatpush1.bf16.msra.mxu0 0
        %2193 = vmatprep.subr.bf16.mxu0 0
        %2194 = vmatpush1.bf16.msra.mxu0 0
        %2195 = vmatprep.subr.bf16.mxu0 0
        %2196 = vmatpush1.bf16.msra.mxu0 0
        %2197 = vmatprep.subr.bf16.mxu0 0
        %2198 = vmatpush1.bf16.msra.mxu0 0
        %2199 = vmatprep.subr.bf16.mxu0 0
        %2200 = vmatpush1.bf16.msra.mxu0 0
        %2201 = vmatprep.subr.bf16.mxu0 0
        %2202 = vmatpush1.bf16.msra.mxu0 0
        %2203 = vmatprep.subr.bf16.mxu0 0
        %2204 = vmatpush1.bf16.msra.mxu0 0
        %2205 = vmatprep.subr.bf16.mxu0 0
        %2206 = vmatpush1.bf16.msra.mxu0 0
        %2207 = vmatprep.subr.bf16.mxu0 0
        %2208 = vmatpush1.bf16.msra.mxu0 0
        %2209 = vmatprep.mubr.bf16.mxu0 0
        %2210 = vmatmul.mubr.bf16.gmra.mrb[0].mxu0 %v1353
        %v2211 = vpop.f32.mrb[0].mxu0
        %v2212 = vadd.f32 0.0, %v2211
        %v2213 = vpop.f32.mrb[0].mxu0
        %v2214 = vpop.f32.mrb[0].mxu0
        %v2215 = vadd.f32 0.0, %v2214
        %v2216 = vpop.f32.mrb[0].mxu0
        %2217 = vmatprep.mubr.bf16.mxu0 0
        %2218 = vmatmul.mubr.bf16.gmra.mrb[0].mxu0 %v1356
        %v2219 = vpop.f32.mrb[0].mxu0
        %v2220 = vadd.f32 0.0, %v2219
        %v2221 = vpop.f32.mrb[0].mxu0
        %v2222 = vpop.f32.mrb[0].mxu0
        %v2223 = vadd.f32 0.0, %v2222
        %v2224 = vpop.f32.mrb[0].mxu0
        %2225 = vmatprep.mubr.bf16.mxu0 0
        %2226 = vmatmul.mubr.bf16.gmra.mrb[0].mxu0 %v1359
        %v2227 = vpop.f32.mrb[0].mxu0
        %v2228 = vadd.f32 0.0, %v2227
        %v2229 = vpop.f32.mrb[0].mxu0
        %v2230 = vpop.f32.mrb[0].mxu0
        %v2231 = vadd.f32 0.0, %v2230
        %v2232 = vpop.f32.mrb[0].mxu0
        %2233 = vmatprep.mubr.bf16.mxu0 0
        %2234 = vmatmul.mubr.bf16.gmra.mrb[0].mxu0 %v1362
        %v2235 = vpop.f32.mrb[0].mxu0
        %v2236 = vadd.f32 0.0, %v2235
        %v2237 = vpop.f32.mrb[0].mxu0
        %v2238 = vpop.f32.mrb[0].mxu0
        %v2239 = vadd.f32 0.0, %v2238
        %v2240 = vpop.f32.mrb[0].mxu0
        %2241 = vmatprep.mubr.bf16.mxu0 0
        %2242 = vmatmul.mubr.bf16.gmra.mrb[0].mxu0 %v1365
        %v2243 = vpop.f32.mrb[0].mxu0
        %v2244 = vadd.f32 0.0, %v2243
        %v2245 = vpop.f32.mrb[0].mxu0
        %v2246 = vpop.f32.mrb[0].mxu0
        %v2247 = vadd.f32 0.0, %v2246
        %v2248 = vpop.f32.mrb[0].mxu0
        %2249 = vmatprep.mubr.bf16.mxu0 0
        %2250 = vmatmul.mubr.bf16.gmra.mrb[0].mxu0 %v1368
        %v2251 = vpop.f32.mrb[0].mxu0
        %v2252 = vadd.f32 0.0, %v2251
        %v2253 = vpop.f32.mrb[0].mxu0
        %v2254 = vpop.f32.mrb[0].mxu0
        %v2255 = vadd.f32 0.0, %v2254
        %v2256 = vpop.f32.mrb[0].mxu0
        %2257 = vmatprep.mubr.bf16.mxu0 0
        %2258 = vmatmul.mubr.bf16.gmra.mrb[0].mxu0 %v1770
        %v2259 = vpop.f32.mrb[0].mxu0
        %v2260 = vadd.f32 0.0, %v2259
        %v2261 = vpop.f32.mrb[0].mxu0
        %v2262 = vpop.f32.mrb[0].mxu0
        %v2263 = vadd.f32 0.0, %v2262
        %v2264 = vpop.f32.mrb[0].mxu0
        %2265 = vmatprep.mubr.bf16.mxu0 0
        %2266 = vmatmul.mubr.bf16.gmra.mrb[0].mxu0 %v2172
        %v2267 = vpop.f32.mrb[0].mxu0
        %v2268 = vadd.f32 0.0, %v2267
        %v2269 = vpop.f32.mrb[0].mxu0
        %v2270 = vpop.f32.mrb[0].mxu0
        %v2271 = vadd.f32 0.0, %v2270
        %v2272 = vpop.f32.mrb[0].mxu0
        %2273 = vdwg.mxu0
        %v2274 = vadd.f32 %v2136, %v2212
        %v2275 = vadd.f32 %v2137, %v2215
        %v2276 = vadd.f32 %v2138, %v2220
        %v2277 = vadd.f32 %v2139, %v2223
        %v2278 = vadd.f32 %v2140, %v2228
        %v2279 = vadd.f32 %v2141, %v2231
        %v2280 = vadd.f32 %v2142, %v2236
        %v2281 = vadd.f32 %v2143, %v2239
        %v2282 = vadd.f32 %v2144, %v2244
        %v2283 = vadd.f32 %v2145, %v2247
        %v2284 = vadd.f32 %v2146, %v2252
        %v2285 = vadd.f32 %v2147, %v2255
        %v2286 = vadd.f32 %v2148, %v2260
        %v2287 = vadd.f32 %v2149, %v2263
        %v2288 = vadd.f32 %v2150, %v2268
        %v2289 = vadd.f32 %v2151, %v2271
        %v2291 = vlaneseq
        %v2292 = vshrl.u32 %v2291, 7
        %v2293 = vsub.s32 0, %v2292
        %v2294 = vrot.slane %v775, %v2293
        %v2296 = vadd.f32 %v2274, %v2294
        %v2297 = vadd.f32 %v2275, %v2294
        %v2298 = vadd.f32 %v2276, %v2294
        %v2299 = vadd.f32 %v2277, %v2294
        %v2300 = vadd.f32 %v2278, %v2294
        %v2301 = vadd.f32 %v2279, %v2294
        %v2302 = vadd.f32 %v2280, %v2294
        %v2303 = vadd.f32 %v2281, %v2294
        %v2304 = vadd.f32 %v2282, %v2294
        %v2305 = vadd.f32 %v2283, %v2294
        %v2306 = vadd.f32 %v2284, %v2294
        %v2307 = vadd.f32 %v2285, %v2294
        %v2308 = vadd.f32 %v2286, %v2294
        %v2309 = vadd.f32 %v2287, %v2294
        %v2310 = vadd.f32 %v2288, %v2294
        %v2311 = vadd.f32 %v2289, %v2294
        %v2312 = vmax.f32 %v2296, 0.0
        %v2313 = vmax.f32 %v2297, 0.0
        %v2314 = vmax.f32 %v2298, 0.0
        %v2315 = vmax.f32 %v2299, 0.0
        %v2316 = vmax.f32 %v2300, 0.0
        %v2317 = vmax.f32 %v2301, 0.0
        %v2318 = vmax.f32 %v2302, 0.0
        %v2319 = vmax.f32 %v2303, 0.0
        %v2320 = vmax.f32 %v2304, 0.0
        %v2321 = vmax.f32 %v2305, 0.0
        %v2322 = vmax.f32 %v2306, 0.0
        %v2323 = vmax.f32 %v2307, 0.0
        %v2324 = vmax.f32 %v2308, 0.0
        %v2325 = vmax.f32 %v2309, 0.0
        %v2326 = vmax.f32 %v2310, 0.0
        %v2327 = vmax.f32 %v2311, 0.0
        %v2328 = vpack.c.bf16 %v2313, %v2312
        %v2329 = vpack.c.bf16 %v2315, %v2314
        %v2330 = vpack.c.bf16 %v2317, %v2316
        %v2331 = vpack.c.bf16 %v2319, %v2318
        %v2332 = vpack.c.bf16 %v2321, %v2320
        %v2333 = vpack.c.bf16 %v2323, %v2322
        %v2334 = vpack.c.bf16 %v2325, %v2324
        %v2335 = vpack.c.bf16 %v2327, %v2326
        %v2336 = vld [vmem:[%s5] sm:$0xf]
        %v2337 = vld [vmem:[%s6] sm:$0x1]
        %v2339 = vlaneseq
        %v2340 = vshrl.u32 %v2339, 7
        %v2341 = vsub.s32 0, %v2340
        %v2342 = vrot.slane %v2337, %v2341
        %v2345 = vsel %vm957, %v2328, 0
        %v2348 = vsel %vm957, %v2329, 0
        %v2351 = vsel %vm957, %v2330, 0
        %v2354 = vsel %vm957, %v2331, 0
        %v2357 = vsel %vm957, %v2332, 0
        %v2360 = vsel %vm957, %v2333, 0
        %v2363 = vsel %vm957, %v2334, 0
        %v2366 = vsel %vm957, %v2335, 0
        %v2369 = vsel %vm982, %v2336, 0
        %2371 = vmatprep.subr.bf16.mxu0 0
        %2372 = vmatpush1.bf16.msra.mxu0 %v2369
        %2373 = vmatprep.subr.bf16.mxu0 0
        %2374 = vmatpush1.bf16.msra.mxu0 0
        %2375 = vmatprep.subr.bf16.mxu0 0
        %2376 = vmatpush1.bf16.msra.mxu0 0
        %2377 = vmatprep.subr.bf16.mxu0 0
        %2378 = vmatpush1.bf16.msra.mxu0 0
        %2379 = vmatprep.subr.bf16.mxu0 0
        %2380 = vmatpush1.bf16.msra.mxu0 0
        %2381 = vmatprep.subr.bf16.mxu0 0
        %2382 = vmatpush1.bf16.msra.mxu0 0
        %2383 = vmatprep.subr.bf16.mxu0 0
        %2384 = vmatpush1.bf16.msra.mxu0 0
        %2385 = vmatprep.subr.bf16.mxu0 0
        %2386 = vmatpush1.bf16.msra.mxu0 0
        %2387 = vmatprep.subr.bf16.mxu0 0
        %2388 = vmatpush1.bf16.msra.mxu0 0
        %2389 = vmatprep.subr.bf16.mxu0 0
        %2390 = vmatpush1.bf16.msra.mxu0 0
        %2391 = vmatprep.subr.bf16.mxu0 0
        %2392 = vmatpush1.bf16.msra.mxu0 0
        %2393 = vmatprep.subr.bf16.mxu0 0
        %2394 = vmatpush1.bf16.msra.mxu0 0
        %2395 = vmatprep.subr.bf16.mxu0 0
        %2396 = vmatpush1.bf16.msra.mxu0 0
        %2397 = vmatprep.subr.bf16.mxu0 0
        %2398 = vmatpush1.bf16.msra.mxu0 0
        %2399 = vmatprep.subr.bf16.mxu0 0
        %2400 = vmatpush1.bf16.msra.mxu0 0
        %2401 = vmatprep.subr.bf16.mxu0 0
        %2402 = vmatpush1.bf16.msra.mxu0 0
        %2403 = vmatprep.mubr.bf16.mxu0 0
        %2404 = vmatmul.mubr.bf16.gmra.mrb[0].mxu0 %v2345
        %v2405 = vpop.f32.mrb[0].mxu0
        %v2406 = vadd.f32 %v2342, %v2405
        %v2407 = vpop.f32.mrb[0].mxu0
        %v2408 = vpop.f32.mrb[0].mxu0
        %v2409 = vadd.f32 %v2342, %v2408
        %v2410 = vpop.f32.mrb[0].mxu0
        %2411 = vmatprep.mubr.bf16.mxu0 0
        %2412 = vmatmul.mubr.bf16.gmra.mrb[0].mxu0 %v2348
        %v2413 = vpop.f32.mrb[0].mxu0
        %v2414 = vadd.f32 %v2342, %v2413
        %v2415 = vpop.f32.mrb[0].mxu0
        %v2416 = vpop.f32.mrb[0].mxu0
        %v2417 = vadd.f32 %v2342, %v2416
        %v2418 = vpop.f32.mrb[0].mxu0
        %2419 = vmatprep.mubr.bf16.mxu0 0
        %2420 = vmatmul.mubr.bf16.gmra.mrb[0].mxu0 %v2351
        %v2421 = vpop.f32.mrb[0].mxu0
        %v2422 = vadd.f32 %v2342, %v2421
        %v2423 = vpop.f32.mrb[0].mxu0
        %v2424 = vpop.f32.mrb[0].mxu0
        %v2425 = vadd.f32 %v2342, %v2424
        %v2426 = vpop.f32.mrb[0].mxu0
        %2427 = vmatprep.mubr.bf16.mxu0 0
        %2428 = vmatmul.mubr.bf16.gmra.mrb[0].mxu0 %v2354
        %v2429 = vpop.f32.mrb[0].mxu0
        %v2430 = vadd.f32 %v2342, %v2429
        %v2431 = vpop.f32.mrb[0].mxu0
        %v2432 = vpop.f32.mrb[0].mxu0
        %v2433 = vadd.f32 %v2342, %v2432
        %v2434 = vpop.f32.mrb[0].mxu0
        %2435 = vmatprep.mubr.bf16.mxu0 0
        %2436 = vmatmul.mubr.bf16.gmra.mrb[0].mxu0 %v2357
        %v2437 = vpop.f32.mrb[0].mxu0
        %v2438 = vadd.f32 %v2342, %v2437
        %v2439 = vpop.f32.mrb[0].mxu0
        %v2440 = vpop.f32.mrb[0].mxu0
        %v2441 = vadd.f32 %v2342, %v2440
        %v2442 = vpop.f32.mrb[0].mxu0
        %2443 = vmatprep.mubr.bf16.mxu0 0
        %2444 = vmatmul.mubr.bf16.gmra.mrb[0].mxu0 %v2360
        %v2445 = vpop.f32.mrb[0].mxu0
        %v2446 = vadd.f32 %v2342, %v2445
        %v2447 = vpop.f32.mrb[0].mxu0
        %v2448 = vpop.f32.mrb[0].mxu0
        %v2449 = vadd.f32 %v2342, %v2448
        %v2450 = vpop.f32.mrb[0].mxu0
        %2451 = vmatprep.mubr.bf16.mxu0 0
        %2452 = vmatmul.mubr.bf16.gmra.mrb[0].mxu0 %v2363
        %v2453 = vpop.f32.mrb[0].mxu0
        %v2454 = vadd.f32 %v2342, %v2453
        %v2455 = vpop.f32.mrb[0].mxu0
        %v2456 = vpop.f32.mrb[0].mxu0
        %v2457 = vadd.f32 %v2342, %v2456
        %v2458 = vpop.f32.mrb[0].mxu0
        %2459 = vmatprep.mubr.bf16.mxu0 0
        %2460 = vmatmul.mubr.bf16.gmra.mrb[0].mxu0 %v2366
        %v2461 = vpop.f32.mrb[0].mxu0
        %v2462 = vadd.f32 %v2342, %v2461
        %v2463 = vpop.f32.mrb[0].mxu0
        %v2464 = vpop.f32.mrb[0].mxu0
        %v2465 = vadd.f32 %v2342, %v2464
        %v2466 = vpop.f32.mrb[0].mxu0
        %2467 = vdwg.mxu0
        %v2468 = vld [vmem:[%s7] sm:$0x3]
        %v2469 = vld [vmem:[%s8] sm:$0x1]
        %v2471 = vlaneseq
        %v2472 = vshrl.u32 %v2471, 7
        %v2473 = vsub.s32 0, %v2472
        %v2474 = vrot.slane %v2469, %v2473
        %v2477 = vsel %vm444, %v2468, 0
        %2479 = vmatprep.subr.bf16.mxu0 0
        %2480 = vmatpush1.bf16.msra.mxu0 %v2477
        %2481 = vmatprep.subr.bf16.mxu0 0
        %2482 = vmatpush1.bf16.msra.mxu0 0
        %2483 = vmatprep.subr.bf16.mxu0 0
        %2484 = vmatpush1.bf16.msra.mxu0 0
        %2485 = vmatprep.subr.bf16.mxu0 0
        %2486 = vmatpush1.bf16.msra.mxu0 0
        %2487 = vmatprep.subr.bf16.mxu0 0
        %2488 = vmatpush1.bf16.msra.mxu0 0
        %2489 = vmatprep.subr.bf16.mxu0 0
        %2490 = vmatpush1.bf16.msra.mxu0 0
        %2491 = vmatprep.subr.bf16.mxu0 0
        %2492 = vmatpush1.bf16.msra.mxu0 0
        %2493 = vmatprep.subr.bf16.mxu0 0
        %2494 = vmatpush1.bf16.msra.mxu0 0
        %2495 = vmatprep.subr.bf16.mxu0 0
        %2496 = vmatpush1.bf16.msra.mxu0 0
        %2497 = vmatprep.subr.bf16.mxu0 0
        %2498 = vmatpush1.bf16.msra.mxu0 0
        %2499 = vmatprep.subr.bf16.mxu0 0
        %2500 = vmatpush1.bf16.msra.mxu0 0
        %2501 = vmatprep.subr.bf16.mxu0 0
        %2502 = vmatpush1.bf16.msra.mxu0 0
        %2503 = vmatprep.subr.bf16.mxu0 0
        %2504 = vmatpush1.bf16.msra.mxu0 0
        %2505 = vmatprep.subr.bf16.mxu0 0
        %2506 = vmatpush1.bf16.msra.mxu0 0
        %2507 = vmatprep.subr.bf16.mxu0 0
        %2508 = vmatpush1.bf16.msra.mxu0 0
        %2509 = vmatprep.subr.bf16.mxu0 0
        %2510 = vmatpush1.bf16.msra.mxu0 0
        %2511 = vmatprep.mubr.bf16.mxu0 0
        %2512 = vmatmul.mubr.bf16.gmra.mrb[0].mxu0 %v421
        %v2513 = vpop.f32.mrb[0].mxu0
        %v2514 = vadd.f32 %v2474, %v2513
        %v2515 = vpop.f32.mrb[0].mxu0
        %v2516 = vpop.f32.mrb[0].mxu0
        %v2517 = vadd.f32 %v2474, %v2516
        %v2518 = vpop.f32.mrb[0].mxu0
        %2519 = vmatprep.mubr.bf16.mxu0 0
        %2520 = vmatmul.mubr.bf16.gmra.mrb[0].mxu0 %v424
        %v2521 = vpop.f32.mrb[0].mxu0
        %v2522 = vadd.f32 %v2474, %v2521
        %v2523 = vpop.f32.mrb[0].mxu0
        %v2524 = vpop.f32.mrb[0].mxu0
        %v2525 = vadd.f32 %v2474, %v2524
        %v2526 = vpop.f32.mrb[0].mxu0
        %2527 = vmatprep.mubr.bf16.mxu0 0
        %2528 = vmatmul.mubr.bf16.gmra.mrb[0].mxu0 %v427
        %v2529 = vpop.f32.mrb[0].mxu0
        %v2530 = vadd.f32 %v2474, %v2529
        %v2531 = vpop.f32.mrb[0].mxu0
        %v2532 = vpop.f32.mrb[0].mxu0
        %v2533 = vadd.f32 %v2474, %v2532
        %v2534 = vpop.f32.mrb[0].mxu0
        %2535 = vmatprep.mubr.bf16.mxu0 0
        %2536 = vmatmul.mubr.bf16.gmra.mrb[0].mxu0 %v430
        %v2537 = vpop.f32.mrb[0].mxu0
        %v2538 = vadd.f32 %v2474, %v2537
        %v2539 = vpop.f32.mrb[0].mxu0
        %v2540 = vpop.f32.mrb[0].mxu0
        %v2541 = vadd.f32 %v2474, %v2540
        %v2542 = vpop.f32.mrb[0].mxu0
        %2543 = vmatprep.mubr.bf16.mxu0 0
        %2544 = vmatmul.mubr.bf16.gmra.mrb[0].mxu0 %v433
        %v2545 = vpop.f32.mrb[0].mxu0
        %v2546 = vadd.f32 %v2474, %v2545
        %v2547 = vpop.f32.mrb[0].mxu0
        %v2548 = vpop.f32.mrb[0].mxu0
        %v2549 = vadd.f32 %v2474, %v2548
        %v2550 = vpop.f32.mrb[0].mxu0
        %2551 = vmatprep.mubr.bf16.mxu0 0
        %2552 = vmatmul.mubr.bf16.gmra.mrb[0].mxu0 %v436
        %v2553 = vpop.f32.mrb[0].mxu0
        %v2554 = vadd.f32 %v2474, %v2553
        %v2555 = vpop.f32.mrb[0].mxu0
        %v2556 = vpop.f32.mrb[0].mxu0
        %v2557 = vadd.f32 %v2474, %v2556
        %v2558 = vpop.f32.mrb[0].mxu0
        %2559 = vmatprep.mubr.bf16.mxu0 0
        %2560 = vmatmul.mubr.bf16.gmra.mrb[0].mxu0 %v439
        %v2561 = vpop.f32.mrb[0].mxu0
        %v2562 = vadd.f32 %v2474, %v2561
        %v2563 = vpop.f32.mrb[0].mxu0
        %v2564 = vpop.f32.mrb[0].mxu0
        %v2565 = vadd.f32 %v2474, %v2564
        %v2566 = vpop.f32.mrb[0].mxu0
        %2567 = vmatprep.mubr.bf16.mxu0 0
        %2568 = vmatmul.mubr.bf16.gmra.mrb[0].mxu0 %v442
        %v2569 = vpop.f32.mrb[0].mxu0
        %v2570 = vadd.f32 %v2474, %v2569
        %v2571 = vpop.f32.mrb[0].mxu0
        %v2572 = vpop.f32.mrb[0].mxu0
        %v2573 = vadd.f32 %v2474, %v2572
        %v2574 = vpop.f32.mrb[0].mxu0
        %2575 = vdwg.mxu0
        %v2576 = vadd.f32 %v2406, %v2514
        %v2577 = vadd.f32 %v2409, %v2517
        %v2578 = vadd.f32 %v2414, %v2522
        %v2579 = vadd.f32 %v2417, %v2525
        %v2580 = vadd.f32 %v2422, %v2530
        %v2581 = vadd.f32 %v2425, %v2533
        %v2582 = vadd.f32 %v2430, %v2538
        %v2583 = vadd.f32 %v2433, %v2541
        %v2584 = vadd.f32 %v2438, %v2546
        %v2585 = vadd.f32 %v2441, %v2549
        %v2586 = vadd.f32 %v2446, %v2554
        %v2587 = vadd.f32 %v2449, %v2557
        %v2588 = vadd.f32 %v2454, %v2562
        %v2589 = vadd.f32 %v2457, %v2565
        %v2590 = vadd.f32 %v2462, %v2570
        %v2591 = vadd.f32 %v2465, %v2573
        %v2592 = vmax.f32 %v2576, 0.0
        %v2593 = vmax.f32 %v2577, 0.0
        %v2594 = vmax.f32 %v2578, 0.0
        %v2595 = vmax.f32 %v2579, 0.0
        %v2596 = vmax.f32 %v2580, 0.0
        %v2597 = vmax.f32 %v2581, 0.0
        %v2598 = vmax.f32 %v2582, 0.0
        %v2599 = vmax.f32 %v2583, 0.0
        %v2600 = vmax.f32 %v2584, 0.0
        %v2601 = vmax.f32 %v2585, 0.0
        %v2602 = vmax.f32 %v2586, 0.0
        %v2603 = vmax.f32 %v2587, 0.0
        %v2604 = vmax.f32 %v2588, 0.0
        %v2605 = vmax.f32 %v2589, 0.0
        %v2606 = vmax.f32 %v2590, 0.0
        %v2607 = vmax.f32 %v2591, 0.0
        %vm2608 = vcmask 130048
        %2609 = vst.msk [vmem:[%s339] sm:$0xff] %vm2608, %v2592
        %2610 = vst.msk [vmem:[%s339 + $0x8] sm:$0xff] %vm2608, %v2593
        %2611 = vst.msk [vmem:[%s339 + $0x10] sm:$0xff] %vm2608, %v2594
        %2612 = vst.msk [vmem:[%s339 + $0x18] sm:$0xff] %vm2608, %v2595
        %2613 = vst.msk [vmem:[%s339 + $0x20] sm:$0xff] %vm2608, %v2596
        %2614 = vst.msk [vmem:[%s339 + $0x28] sm:$0xff] %vm2608, %v2597
        %2615 = vst.msk [vmem:[%s339 + $0x30] sm:$0xff] %vm2608, %v2598
        %2616 = vst.msk [vmem:[%s339 + $0x38] sm:$0xff] %vm2608, %v2599
        %2617 = vst.msk [vmem:[%s339 + $0x40] sm:$0xff] %vm2608, %v2600
        %2618 = vst.msk [vmem:[%s339 + $0x48] sm:$0xff] %vm2608, %v2601
        %2619 = vst.msk [vmem:[%s339 + $0x50] sm:$0xff] %vm2608, %v2602
        %2620 = vst.msk [vmem:[%s339 + $0x58] sm:$0xff] %vm2608, %v2603
        %2621 = vst.msk [vmem:[%s339 + $0x60] sm:$0xff] %vm2608, %v2604
        %2622 = vst.msk [vmem:[%s339 + $0x68] sm:$0xff] %vm2608, %v2605
        %2623 = vst.msk [vmem:[%s339 + $0x70] sm:$0xff] %vm2608, %v2606
        %2624 = vst.msk [vmem:[%s339 + $0x78] sm:$0xff] %vm2608, %v2607
        %s2625 = sand.u32 %s239, 1
        %s2626 = scalar_lea.sflag [#allocation4], %s2625
        %s2627 = sand.u32 %s239, 1
        %s2628 = smul.addr %s2627, 128
        %s2629 = scalar_lea.vmem [#allocation3], %s2628
        // Predicated region
        $region73: #{tpu_custom_call.1} parent=55 // pred_check
          %p2630 = pneg %p249
        $region74: #{tpu_custom_call.1} parent=55 // pred_check_branch
          %2632 = sbr.rel (%p2630) target = $region76
        $region75: #{tpu_custom_call.1} parent=55 // pred_region
          %s2633 = smul.u32 8, %s28
          %s2635 = ssub.s32 2048, 2048
          %2636 = vsyncadd %s2626, %s2635
          %s2637 = smul.addr %s2633, 2
          %s2638 = smul.addr %s27, 32
          %s2639 = sadd.s32 %s2637, %s2638
          %s2640 = smul.addr %s2639, 128
          %s2641 = scalar_lea.hbm %s9, %s2640
          %s2642 = sshll.u32 %s2629, 4
          %s2643 = int_to_ptr.vmem [resolvable:$true] %s2642
          %2648 = dma.vmem_to_hbm [thread:$0]  %s2643, 2048, %s2641, %s2626, 128, 128, 8
        $region76: #{tpu_custom_call.1} parent=55 // pred_fallthru
          _
      $region56: #{tpu_custom_call.1} parent=5 // pred_fallthru
        _
      %p2649 = scmp.le.s32.totalorder 2, %s18
      // Predicated region
      $region77: #{tpu_custom_call.1} parent=5 // pred_check
        %p2650 = pneg %p2649
      $region78: #{tpu_custom_call.1} parent=5 // pred_check_branch
        %2652 = sbr.rel (%p2650) target = $region80
      $region79: #{tpu_custom_call.1} parent=5 // pred_region
        %s2653 = ssub.s32 %s18, 2
        // Predicated region
        $region81: #{tpu_custom_call.1} parent=79 // pred_check
          %p2654 = pneg %p255
        $region82: #{tpu_custom_call.1} parent=79 // pred_check_branch
          %2656 = sbr.rel (%p2654) target = $region84
        $region83: #{tpu_custom_call.1} parent=79 // pred_region
          %s2657 = sand.u32 %s240, 1
          %s2658 = scalar_lea.sflag [#allocation4], %s2657
          %s2659 = sand.u32 %s240, 1
          %s2660 = smul.addr %s2659, 128
          %s2661 = scalar_lea.vmem [#allocation3], %s2660
          %2662 = dma.done %s2658, 2048
        $region84: #{tpu_custom_call.1} parent=79 // pred_fallthru
          _
      $region80: #{tpu_custom_call.1} parent=5 // pred_fallthru
        _
    $region6: #{tpu_custom_call.1} parent=1 // loop_footer
      %s22 = sadd.s32 1, %s18
    $region7: #{tpu_custom_call.1} parent=1 // loop_footer_branch
      %17 = sbr.rel target = $region3
    $region8: #{tpu_custom_call.1} parent=1 // loop_exit
      _
    %2663 = vsyncpa [#allocation4], 1
    %s2664 = scalar_lea.sflag [#allocation4], 1
    %2665 = vsyncpa %s2664, 1

</llo_original>
